<compile_context>
chip_gen: v6e
topology: v6e:2x2x1
jax: 0.10.0
libtpu: 0.0.40
codegen_flags: <defaults>
</compile_context>

<pallas_src>
import jax
import jax.numpy as jnp
import numpy as np
from jax.experimental import pallas as pl
from jax.experimental.pallas import tpu as pltpu


PAD = 128          # lane-padded feature width for all activations / weights
NUM_LAYERS = 7     # 8 original layers, encoder4+decoder1 fused -> 7


def portrayer_kernel(x_ref, w_ref, b_ref, out_ref):
    """One batch tile of the whole forward pass.

    x_ref:   (TB, 128)      bf16, input padded to 128 lanes
    w_ref:   (7, 128, 128)  bf16, zero-padded packed weights (in, out) per layer
    b_ref:   (8, 128)       f32,  packed biases (rows 0..6 used)
    out_ref: (TB, 128)      f32,  lane-dense output (real features in cols :y_in)
    """
    biases = b_ref[...]                      # load the single bias tile once

    def layer(h_bf16, idx):
        # MXU matmul with f32 accumulation + bias broadcast over batch rows.
        acc = jnp.dot(h_bf16, w_ref[idx], preferred_element_type=jnp.float32)
        return acc + biases[idx:idx + 1, :]

    relu = lambda h: jnp.maximum(h, 0.0)     # f32 elementwise (v5e-friendly)
    bf = lambda h: h.astype(jnp.bfloat16)    # cast only the matmul operand

    x = x_ref[...]
    e1 = relu(layer(x, 0))                   # encoder1
    e2 = relu(layer(bf(e1), 1))              # encoder2
    e3 = relu(layer(bf(e2), 2))              # encoder3
    d1 = relu(layer(bf(e3), 3))              # fused encoder4 + decoder1
    d2 = relu(layer(bf(d1 + e3), 4))         # decoder2 (skip + e3)
    d3 = relu(layer(bf(d2 + e2), 5))         # decoder3 (skip + e2)
    out_ref[...] = layer(bf(d3 + e1), 6)     # decoder4 (skip + e1), no ReLU


def init_params(key, dims):
    """dims = [y_in, y1, y2, y3, y4]; encoder1..4 then decoder1..4.
    PyTorch-Linear-style U(-1/sqrt(fan_in), 1/sqrt(fan_in)). w is (in, out)."""
    layer_dims = [
        (dims[0], dims[1]), (dims[1], dims[2]), (dims[2], dims[3]), (dims[3], dims[4]),
        (dims[4], dims[3]), (dims[3], dims[2]), (dims[2], dims[1]), (dims[1], dims[0]),
    ]
    params = []
    for (fan_in, fan_out) in layer_dims:
        key, kw, kb = jax.random.split(key, 3)
        bound = 1.0 / np.sqrt(fan_in)
        w = jax.random.uniform(kw, (fan_in, fan_out), jnp.float32, -bound, bound)
        b = jax.random.uniform(kb, (1, fan_out), jnp.float32, -bound, bound)
        params.append((w, b))
    return params


def prepare_packed_params(params):
    """Fuse encoder4+decoder1 and pack weights/biases into padded buffers."""
    (w1, b1), (w2, b2), (w3, b3), (w4, b4), (w5, b5), (w6, b6), (w7, b7), (w8, b8) = params
    w45 = w4 @ w5                 # (y3, y3), fused in f32 on host
    b45 = b4 @ w5 + b5            # (1, y3)
    fused = [(w1, b1), (w2, b2), (w3, b3), (w45, b45), (w6, b6), (w7, b7), (w8, b8)]

    w_pack = np.zeros((NUM_LAYERS, PAD, PAD), np.float32)
    b_pack = np.zeros((8, PAD), np.float32)          # pad rows to 8 (one sublane tile)
    fused_dims = []
    for i, (w, b) in enumerate(fused):
        fi, fo = w.shape
        fused_dims.append((fi, fo))
        w_pack[i, :fi, :fo] = np.asarray(w, np.float32)
        b_pack[i, :fo] = np.asarray(b, np.float32).reshape(-1)
    return (jnp.asarray(w_pack, jnp.bfloat16),
            jnp.asarray(b_pack, jnp.float32),
            fused_dims)


def portrayer_forward(x, w_pack, b_pack, *, block_batch=128):
    """x: (B, y_in) f32. Returns (B, y_in) f32."""
    B, y_in = x.shape
    n_blocks = pl.cdiv(B, block_batch)
    Bp = n_blocks * block_batch

    # Pad batch to a tile multiple and features to 128 lanes; cast to bf16.
    xp = jnp.zeros((Bp, PAD), jnp.bfloat16).at[:B, :y_in].set(x.astype(jnp.bfloat16))

    out = pl.pallas_call(
        portrayer_kernel,
        out_shape=jax.ShapeDtypeStruct((Bp, PAD), jnp.float32),
        grid_spec=pltpu.PrefetchScalarGridSpec(
            num_scalar_prefetch=0,
            grid=(n_blocks,),
            in_specs=[
                pl.BlockSpec((block_batch, PAD), lambda i: (i, 0)),       # x tile
                pl.BlockSpec((NUM_LAYERS, PAD, PAD), lambda i: (0, 0, 0)),  # weights (resident)
                pl.BlockSpec((8, PAD), lambda i: (0, 0)),                 # biases (resident)
            ],
            out_specs=pl.BlockSpec((block_batch, PAD), lambda i: (i, 0)),
        ),
        compiler_params=pltpu.CompilerParams(
            dimension_semantics=("parallel",)),   # batch tiles -> both TCs on v7x
    )(xp, w_pack, b_pack)

    return out[:B, :y_in]


# ---------------------------------------------------------------------------
# Pure-JAX references
# ---------------------------------------------------------------------------
def portrayer_reference_f32(x, params):
    """Original (unfused, f32) module semantics."""
    lin = lambda h, p: h @ p[0] + p[1]
    relu = lambda h: jnp.maximum(h, 0.0)
    e1 = relu(lin(x, params[0]))
    e2 = relu(lin(e1, params[1]))
    e3 = relu(lin(e2, params[2]))
    e4 = lin(e3, params[3])
    d1 = relu(lin(e4, params[4]))
    d2 = relu(lin(d1 + e3, params[5]))
    d3 = relu(lin(d2 + e2, params[6]))
    return lin(d3 + e1, params[7])


def portrayer_reference_matched(x, w_pack, b_pack, fused_dims):
    """Mirrors the kernel math exactly (bf16 weights, fused layer, f32 accum)."""
    relu = lambda h: jnp.maximum(h, 0.0)
    skips = {}
    h = x
    for i, (fi, fo) in enumerate(fused_dims):
        w = w_pack[i, :fi, :fo]
        b = b_pack[i, :fo]
        acc = jnp.dot(h.astype(jnp.bfloat16), w,
                      preferred_element_type=jnp.float32) + b
        if i < len(fused_dims) - 1:
            h = relu(acc)
        else:
            h = acc
        if i in (0, 1, 2):          # e1, e2, e3
            skips[i] = h
        if i == 3:                  # after fused enc4+dec1 -> add e3
            h = h + skips[2]
        elif i == 4:                # after decoder2 -> add e2
            h = h + skips[1]
        elif i == 5:                # after decoder3 -> add e1
            h = h + skips[0]
    return h


if __name__ == "__main__":
    # Shapes consistent with the module: y_in=32, y1=64, y2=32, y3=16, y4=8.
    y_in, y1, y2, y3, y4 = 32, 64, 32, 16, 8
    batch = 256                      # 2 batch tiles of 128 -> exercises the grid

    key = jax.random.PRNGKey(0)
    key, kx = jax.random.split(key)
    x = jax.random.normal(kx, (batch, y_in), jnp.float32)
    params = init_params(key, [y_in, y1, y2, y3, y4])

    w_pack, b_pack, fused_dims = prepare_packed_params(params)

    out = portrayer_forward(x, w_pack, b_pack, block_batch=128)
    out = jax.block_until_ready(out)

    # 1) Kernel vs. an exactly-matched (bf16 / fused) pure-JAX reference.
    ref_matched = portrayer_reference_matched(x, w_pack, b_pack, fused_dims)
    np.testing.assert_allclose(np.asarray(out), np.asarray(ref_matched),
                               rtol=5e-3, atol=5e-3)

    # 2) Kernel vs. the original f32 module semantics (absorbs bf16 rounding).
    ref_f32 = portrayer_reference_f32(x, params)
    np.testing.assert_allclose(np.asarray(out), np.asarray(ref_f32),
                               rtol=5e-2, atol=5e-2)

    print("KERNEL_OK")
</pallas_src>

<mosaic_0001>
module attributes {stable_mosaic.version = 11 : i64} {
  func.func @portrayer_kernel(%arg0: i32, %arg1: memref<128x128xbf16, #tpu.memory_space<vmem>>, %arg2: memref<7x128x128xbf16, #tpu.memory_space<vmem>>, %arg3: memref<8x128xf32, #tpu.memory_space<vmem>>, %arg4: memref<128x128xf32, #tpu.memory_space<vmem>>) attributes {dimension_semantics = [#tpu.dimension_semantics<parallel>], iteration_bounds = array<i64: 2>, scalar_prefetch = 0 : i64, scratch_operands = 0 : i64, tpu.core_type = #tpu.core_type<tc>, window_params = [{transform_indices = @transform_0, window_bounds = array<i64: 128, 128>}, {pipeline_mode = #tpu.pipeline_mode<synchronous>, transform_indices = @transform_1, window_bounds = array<i64: 7, 128, 128>}, {pipeline_mode = #tpu.pipeline_mode<synchronous>, transform_indices = @transform_2, window_bounds = array<i64: 8, 128>}, {transform_indices = @transform_3, window_bounds = array<i64: 128, 128>}]} {
    %c0 = arith.constant 0 : index
    %c0_0 = arith.constant 0 : index
    %0 = vector.load %arg3[%c0, %c0_0] : memref<8x128xf32, #tpu.memory_space<vmem>>, vector<8x128xf32>
    %c0_1 = arith.constant 0 : index
    %c0_2 = arith.constant 0 : index
    %1 = vector.load %arg1[%c0_1, %c0_2] : memref<128x128xbf16, #tpu.memory_space<vmem>>, vector<128x128xbf16>
    %c0_3 = arith.constant 0 : index
    %c0_4 = arith.constant 0 : index
    %c0_5 = arith.constant 0 : index
    %2 = vector.load %arg2[%c0_3, %c0_4, %c0_5] : memref<7x128x128xbf16, #tpu.memory_space<vmem>>, vector<1x128x128xbf16>
    %3 = vector.shape_cast %2 : vector<1x128x128xbf16> to vector<128x128xbf16>
    %cst = arith.constant dense<0.000000e+00> : vector<128x128xf32>
    %4 = tpu.matmul %1, %3, %cst {dimension_numbers = #tpu.dot_dimension_numbers<[1], [0], [0], [1], [0, 0, 1, 1], [], []>} : vector<128x128xbf16>, vector<128x128xbf16>, vector<128x128xf32> -> vector<128x128xf32>
    %5 = vector.extract_strided_slice %0 {offsets = [0, 0], sizes = [1, 128], strides = [1, 1]} : vector<8x128xf32> to vector<1x128xf32>
    %6 = vector.broadcast %5 : vector<1x128xf32> to vector<128x128xf32>
    %7 = arith.addf %4, %6 : vector<128x128xf32>
    %cst_6 = arith.constant 0.000000e+00 : f32
    %8 = vector.broadcast %cst_6 : f32 to vector<128x128xf32>
    %9 = arith.maximumf %7, %8 : vector<128x128xf32>
    %10 = arith.truncf %9 : vector<128x128xf32> to vector<128x128xbf16>
    %c1 = arith.constant 1 : index
    %c0_7 = arith.constant 0 : index
    %c0_8 = arith.constant 0 : index
    %11 = vector.load %arg2[%c1, %c0_7, %c0_8] : memref<7x128x128xbf16, #tpu.memory_space<vmem>>, vector<1x128x128xbf16>
    %12 = vector.shape_cast %11 : vector<1x128x128xbf16> to vector<128x128xbf16>
    %cst_9 = arith.constant dense<0.000000e+00> : vector<128x128xf32>
    %13 = tpu.matmul %10, %12, %cst_9 {dimension_numbers = #tpu.dot_dimension_numbers<[1], [0], [0], [1], [0, 0, 1, 1], [], []>} : vector<128x128xbf16>, vector<128x128xbf16>, vector<128x128xf32> -> vector<128x128xf32>
    %14 = vector.extract_strided_slice %0 {offsets = [1, 0], sizes = [1, 128], strides = [1, 1]} : vector<8x128xf32> to vector<1x128xf32>
    %15 = vector.broadcast %14 : vector<1x128xf32> to vector<128x128xf32>
    %16 = arith.addf %13, %15 : vector<128x128xf32>
    %cst_10 = arith.constant 0.000000e+00 : f32
    %17 = vector.broadcast %cst_10 : f32 to vector<128x128xf32>
    %18 = arith.maximumf %16, %17 : vector<128x128xf32>
    %19 = arith.truncf %18 : vector<128x128xf32> to vector<128x128xbf16>
    %c2 = arith.constant 2 : index
    %c0_11 = arith.constant 0 : index
    %c0_12 = arith.constant 0 : index
    %20 = vector.load %arg2[%c2, %c0_11, %c0_12] : memref<7x128x128xbf16, #tpu.memory_space<vmem>>, vector<1x128x128xbf16>
    %21 = vector.shape_cast %20 : vector<1x128x128xbf16> to vector<128x128xbf16>
    %cst_13 = arith.constant dense<0.000000e+00> : vector<128x128xf32>
    %22 = tpu.matmul %19, %21, %cst_13 {dimension_numbers = #tpu.dot_dimension_numbers<[1], [0], [0], [1], [0, 0, 1, 1], [], []>} : vector<128x128xbf16>, vector<128x128xbf16>, vector<128x128xf32> -> vector<128x128xf32>
    %23 = vector.extract_strided_slice %0 {offsets = [2, 0], sizes = [1, 128], strides = [1, 1]} : vector<8x128xf32> to vector<1x128xf32>
    %24 = vector.broadcast %23 : vector<1x128xf32> to vector<128x128xf32>
    %25 = arith.addf %22, %24 : vector<128x128xf32>
    %cst_14 = arith.constant 0.000000e+00 : f32
    %26 = vector.broadcast %cst_14 : f32 to vector<128x128xf32>
    %27 = arith.maximumf %25, %26 : vector<128x128xf32>
    %28 = arith.truncf %27 : vector<128x128xf32> to vector<128x128xbf16>
    %c3 = arith.constant 3 : index
    %c0_15 = arith.constant 0 : index
    %c0_16 = arith.constant 0 : index
    %29 = vector.load %arg2[%c3, %c0_15, %c0_16] : memref<7x128x128xbf16, #tpu.memory_space<vmem>>, vector<1x128x128xbf16>
    %30 = vector.shape_cast %29 : vector<1x128x128xbf16> to vector<128x128xbf16>
    %cst_17 = arith.constant dense<0.000000e+00> : vector<128x128xf32>
    %31 = tpu.matmul %28, %30, %cst_17 {dimension_numbers = #tpu.dot_dimension_numbers<[1], [0], [0], [1], [0, 0, 1, 1], [], []>} : vector<128x128xbf16>, vector<128x128xbf16>, vector<128x128xf32> -> vector<128x128xf32>
    %32 = vector.extract_strided_slice %0 {offsets = [3, 0], sizes = [1, 128], strides = [1, 1]} : vector<8x128xf32> to vector<1x128xf32>
    %33 = vector.broadcast %32 : vector<1x128xf32> to vector<128x128xf32>
    %34 = arith.addf %31, %33 : vector<128x128xf32>
    %cst_18 = arith.constant 0.000000e+00 : f32
    %35 = vector.broadcast %cst_18 : f32 to vector<128x128xf32>
    %36 = arith.maximumf %34, %35 : vector<128x128xf32>
    %37 = arith.addf %36, %27 : vector<128x128xf32>
    %38 = arith.truncf %37 : vector<128x128xf32> to vector<128x128xbf16>
    %c4 = arith.constant 4 : index
    %c0_19 = arith.constant 0 : index
    %c0_20 = arith.constant 0 : index
    %39 = vector.load %arg2[%c4, %c0_19, %c0_20] : memref<7x128x128xbf16, #tpu.memory_space<vmem>>, vector<1x128x128xbf16>
    %40 = vector.shape_cast %39 : vector<1x128x128xbf16> to vector<128x128xbf16>
    %cst_21 = arith.constant dense<0.000000e+00> : vector<128x128xf32>
    %41 = tpu.matmul %38, %40, %cst_21 {dimension_numbers = #tpu.dot_dimension_numbers<[1], [0], [0], [1], [0, 0, 1, 1], [], []>} : vector<128x128xbf16>, vector<128x128xbf16>, vector<128x128xf32> -> vector<128x128xf32>
    %42 = vector.extract_strided_slice %0 {offsets = [4, 0], sizes = [1, 128], strides = [1, 1]} : vector<8x128xf32> to vector<1x128xf32>
    %43 = vector.broadcast %42 : vector<1x128xf32> to vector<128x128xf32>
    %44 = arith.addf %41, %43 : vector<128x128xf32>
    %cst_22 = arith.constant 0.000000e+00 : f32
    %45 = vector.broadcast %cst_22 : f32 to vector<128x128xf32>
    %46 = arith.maximumf %44, %45 : vector<128x128xf32>
    %47 = arith.addf %46, %18 : vector<128x128xf32>
    %48 = arith.truncf %47 : vector<128x128xf32> to vector<128x128xbf16>
    %c5 = arith.constant 5 : index
    %c0_23 = arith.constant 0 : index
    %c0_24 = arith.constant 0 : index
    %49 = vector.load %arg2[%c5, %c0_23, %c0_24] : memref<7x128x128xbf16, #tpu.memory_space<vmem>>, vector<1x128x128xbf16>
    %50 = vector.shape_cast %49 : vector<1x128x128xbf16> to vector<128x128xbf16>
    %cst_25 = arith.constant dense<0.000000e+00> : vector<128x128xf32>
    %51 = tpu.matmul %48, %50, %cst_25 {dimension_numbers = #tpu.dot_dimension_numbers<[1], [0], [0], [1], [0, 0, 1, 1], [], []>} : vector<128x128xbf16>, vector<128x128xbf16>, vector<128x128xf32> -> vector<128x128xf32>
    %52 = vector.extract_strided_slice %0 {offsets = [5, 0], sizes = [1, 128], strides = [1, 1]} : vector<8x128xf32> to vector<1x128xf32>
    %53 = vector.broadcast %52 : vector<1x128xf32> to vector<128x128xf32>
    %54 = arith.addf %51, %53 : vector<128x128xf32>
    %cst_26 = arith.constant 0.000000e+00 : f32
    %55 = vector.broadcast %cst_26 : f32 to vector<128x128xf32>
    %56 = arith.maximumf %54, %55 : vector<128x128xf32>
    %57 = arith.addf %56, %9 : vector<128x128xf32>
    %58 = arith.truncf %57 : vector<128x128xf32> to vector<128x128xbf16>
    %c6 = arith.constant 6 : index
    %c0_27 = arith.constant 0 : index
    %c0_28 = arith.constant 0 : index
    %59 = vector.load %arg2[%c6, %c0_27, %c0_28] : memref<7x128x128xbf16, #tpu.memory_space<vmem>>, vector<1x128x128xbf16>
    %60 = vector.shape_cast %59 : vector<1x128x128xbf16> to vector<128x128xbf16>
    %cst_29 = arith.constant dense<0.000000e+00> : vector<128x128xf32>
    %61 = tpu.matmul %58, %60, %cst_29 {dimension_numbers = #tpu.dot_dimension_numbers<[1], [0], [0], [1], [0, 0, 1, 1], [], []>} : vector<128x128xbf16>, vector<128x128xbf16>, vector<128x128xf32> -> vector<128x128xf32>
    %62 = vector.extract_strided_slice %0 {offsets = [6, 0], sizes = [1, 128], strides = [1, 1]} : vector<8x128xf32> to vector<1x128xf32>
    %63 = vector.broadcast %62 : vector<1x128xf32> to vector<128x128xf32>
    %64 = arith.addf %61, %63 : vector<128x128xf32>
    %c0_30 = arith.constant 0 : index
    %c0_31 = arith.constant 0 : index
    %65 = vector.load %arg4[%c0_30, %c0_31] : memref<128x128xf32, #tpu.memory_space<vmem>>, vector<128x128xf32>
    tpu.vector_store %arg4[%c0_30, %c0_31], %64 {strides = array<i32>} : memref<128x128xf32, #tpu.memory_space<vmem>>, vector<128x128xf32>,
    return
  }
  func.func @transform_0(%arg0: i32) -> (i32, i32) {
    %c0_i32 = arith.constant 0 : i32
    %c0_i32_0 = arith.constant 0 : i32
    return %arg0, %c0_i32 : i32, i32
  }
  func.func @transform_1(%arg0: i32) -> (i32, i32, i32) {
    %c0_i32 = arith.constant 0 : i32
    %c0_i32_0 = arith.constant 0 : i32
    %c0_i32_1 = arith.constant 0 : i32
    %c0_i32_2 = arith.constant 0 : i32
    return %c0_i32, %c0_i32_0, %c0_i32_1 : i32, i32, i32
  }
  func.func @transform_2(%arg0: i32) -> (i32, i32) {
    %c0_i32 = arith.constant 0 : i32
    %c0_i32_0 = arith.constant 0 : i32
    %c0_i32_1 = arith.constant 0 : i32
    return %c0_i32, %c0_i32_0 : i32, i32
  }
  func.func @transform_3(%arg0: i32) -> (i32, i32) {
    %c0_i32 = arith.constant 0 : i32
    %c0_i32_0 = arith.constant 0 : i32
    return %arg0, %c0_i32 : i32, i32
  }
}

</mosaic_0001>

<llo_original>
// kernel: tpu_custom_call.1
$region0: #{tpu_custom_call.1}
  #allocation0 [shape = 'u32[]', space=smem, size = 0x4, offset = 0x4, fixed_abs, tag = 'smem constant byte address 0x4 - core index']
  #allocation1 [shape = 'u32[144,128]{1,0:T(1,128)}', space=vmem, size = 0x12000, scoped, tag = 'internal scratch']
  %s0 = inlined_call_operand.hbm [shape: bf16[256,128], index: 0, kind: input, shape index: {}]
  %s1 = inlined_call_operand.hbm [shape: bf16[7,128,128], index: 1, kind: input, shape index: {}]
  %s2 = inlined_call_operand.hbm [shape: f32[8,128], index: 2, kind: input, shape index: {}]
  %s3 = inlined_call_operand.hbm [shape: f32[256,128], index: 3, kind: output, shape index: {}]
  %s4 = sld [smem:[#allocation0]]
  $region57: #{tpu_custom_call.1} parent=0
    _
  %s6 = ssub.s32 1, %s4
  %s7 = scalar_select 0, %s6, %s4
  $region1: #{tpu_custom_call.1} parent=0
    #allocation2 [shape = 'u8[65536]{0}', space=vmem, size = 0x10000, scoped, tag = 'input window, operand 0']
    #allocation3 [shape = 's32[2]{0}', space=sflag, size = 0x8, scoped, tag = 'scoped memory for tpu_custom_call.1']
    #allocation4 [shape = 's32[2]{0}', space=sflag, size = 0x8, scoped, tag = 'scoped memory for tpu_custom_call.1']
    #allocation5 [shape = 'u8[229376]{0}', space=vmem, size = 0x38000, scoped, tag = 'input window, operand 1, single buffered']
    #allocation6 [shape = 's32[1]{0}', space=sflag, size = 0x4, scoped, tag = 'scoped memory for tpu_custom_call.1']
    #allocation7 [shape = 'u8[4096]{0}', space=vmem, size = 0x1000, scoped, tag = 'input window, operand 2, single buffered']
    #allocation8 [shape = 'u8[131072]{0}', space=vmem, size = 0x20000, scoped, tag = 'output window, operand 0']
    %8 = vsyncpa [#allocation3], 0
    %s9 = scalar_lea.sflag [#allocation3], 1
    %10 = vsyncpa %s9, 0
    %11 = vsyncpa [#allocation6], 0
    %12 = vsyncpa [#allocation4], 0
    %s13 = scalar_lea.sflag [#allocation4], 1
    %14 = vsyncpa %s13, 0
    loop: start=0, step=1, limit=4
    $region2: #{tpu_custom_call.1} parent=1 // loop_pre_header
      _
    $region3: #{tpu_custom_call.1} parent=1 // loop_header
      %s16 = sphi 0, %s20
      %p17 = scmp.ge.s32.totalorder %s16, 4
      %s26 = sphi 0, %s28
      %s29 = sphi 0, %s26
      %s30 = sphi 0, %s29
      %s46 = sphi 0, %s30
      %s50 = sphi 0, %s50
      %s52 = sphi 0, %s50
      %s53 = sphi 0, %s52
      %s67 = sphi 0, %s53
      %s71 = sphi 0, %s71
      %s73 = sphi 0, %s71
      %s74 = sphi 0, %s73
      %s88 = sphi 0, %s74
      %s94 = sphi 0, %s96
      %s97 = sphi 0, %s94
      %s98 = sphi 0, %s97
      %s114 = sphi 0, %s98
    $region4: #{tpu_custom_call.1} parent=1 // loop_header_branch
      %19 = sbr.rel (%p17) target = $region8
    $region5: #{tpu_custom_call.1} parent=1 // loop_body
      %s21 = ssub.s32 %s16, 1
      %s22 = ssub.s32 %s16, 2
      %s23 = sadd.s32 %s16, 1
      %s24 = ssub.s32 %s16, %s23
      %p25 = scmp.eq.s32.totalorder %s24, 0
      %s27 = sadd.s32 %s26, 1
      %s28 = scalar_select %p25, %s26, %s27
      %p31 = pneg %p25
      %p32 = scmp.eq.s32.totalorder %s16, 1
      %p33 = por %p31, %p32
      %p34 = scmp.ne.s32.totalorder %s26, %s29
      %p35 = scmp.eq.s32.totalorder %s16, 0
      %p36 = por %p34, %p35
      %p37 = scmp.ne.s32.totalorder %s26, %s29
      %p38 = scmp.eq.s32.totalorder %s21, 1
      %p39 = por %p37, %p38
      %p40 = scmp.ne.s32.totalorder %s29, %s30
      %p41 = scmp.eq.s32.totalorder %s21, 0
      %p42 = por %p40, %p41
      %p43 = scmp.ne.s32.totalorder %s29, %s30
      %p44 = scmp.eq.s32.totalorder %s22, 1
      %p45 = por %p43, %p44
      %p47 = scmp.ne.s32.totalorder %s30, %s46
      %p48 = scmp.eq.s32.totalorder %s22, 0
      %p49 = por %p47, %p48
      %s51 = sadd.s32 %s50, 1
      %p54 = scmp.eq.s32.totalorder %s16, 1
      %p55 = scmp.ne.s32.totalorder %s50, %s52
      %p56 = scmp.eq.s32.totalorder %s16, 0
      %p57 = por %p55, %p56
      %p58 = scmp.ne.s32.totalorder %s50, %s52
      %p59 = scmp.eq.s32.totalorder %s21, 1
      %p60 = por %p58, %p59
      %p61 = scmp.ne.s32.totalorder %s52, %s53
      %p62 = scmp.eq.s32.totalorder %s21, 0
      %p63 = por %p61, %p62
      %p64 = scmp.ne.s32.totalorder %s52, %s53
      %p65 = scmp.eq.s32.totalorder %s22, 1
      %p66 = por %p64, %p65
      %p68 = scmp.ne.s32.totalorder %s53, %s67
      %p69 = scmp.eq.s32.totalorder %s22, 0
      %p70 = por %p68, %p69
      %s72 = sadd.s32 %s71, 1
      %p75 = scmp.eq.s32.totalorder %s16, 1
      %p76 = scmp.ne.s32.totalorder %s71, %s73
      %p77 = scmp.eq.s32.totalorder %s16, 0
      %p78 = por %p76, %p77
      %p79 = scmp.ne.s32.totalorder %s71, %s73
      %p80 = scmp.eq.s32.totalorder %s21, 1
      %p81 = por %p79, %p80
      %p82 = scmp.ne.s32.totalorder %s73, %s74
      %p83 = scmp.eq.s32.totalorder %s21, 0
      %p84 = por %p82, %p83
      %p85 = scmp.ne.s32.totalorder %s73, %s74
      %p86 = scmp.eq.s32.totalorder %s22, 1
      %p87 = por %p85, %p86
      %p89 = scmp.ne.s32.totalorder %s74, %s88
      %p90 = scmp.eq.s32.totalorder %s22, 0
      %p91 = por %p89, %p90
      %s92 = ssub.s32 %s16, %s23
      %p93 = scmp.eq.s32.totalorder %s92, 0
      %s95 = sadd.s32 %s94, 1
      %s96 = scalar_select %p93, %s94, %s95
      %p99 = pneg %p93
      %p100 = scmp.eq.s32.totalorder %s16, 1
      %p101 = por %p99, %p100
      %p102 = scmp.ne.s32.totalorder %s94, %s97
      %p103 = scmp.eq.s32.totalorder %s16, 0
      %p104 = por %p102, %p103
      %p105 = scmp.ne.s32.totalorder %s94, %s97
      %p106 = scmp.eq.s32.totalorder %s21, 1
      %p107 = por %p105, %p106
      %p108 = scmp.ne.s32.totalorder %s97, %s98
      %p109 = scmp.eq.s32.totalorder %s21, 0
      %p110 = por %p108, %p109
      %p111 = scmp.ne.s32.totalorder %s97, %s98
      %p112 = scmp.eq.s32.totalorder %s22, 1
      %p113 = por %p111, %p112
      %p115 = scmp.ne.s32.totalorder %s98, %s114
      %p116 = scmp.eq.s32.totalorder %s22, 0
      %p117 = por %p115, %p116
      %p118 = scmp.le.s32.totalorder 1, %s16
      %p119 = scmp.lt.s32.totalorder %s16, 3
      %p120 = pnand %p118, %p119
      %p121 = pneg %p120
      // Predicated region
      $region9: #{tpu_custom_call.1} parent=5 // pred_check
        _
      $region10: #{tpu_custom_call.1} parent=5 // pred_check_branch
        %123 = sbr.rel (%p120) target = $region12
      $region11: #{tpu_custom_call.1} parent=5 // pred_region
        %s124 = ssub.s32 %s16, 1
        // Predicated region
        $region13: #{tpu_custom_call.1} parent=11 // pred_check
          %p125 = pneg %p63
        $region14: #{tpu_custom_call.1} parent=11 // pred_check_branch
          %127 = sbr.rel (%p125) target = $region16
        $region15: #{tpu_custom_call.1} parent=11 // pred_region
          %s129 = ssub.s32 7168, 7168
          %130 = vsyncadd [#allocation6], %s129
          %s131 = sshll.u32 [#allocation5], 4
          %s132 = int_to_ptr.vmem [resolvable:$true] %s131
          %137 = dma.hbm_to_vmem [thread:$0]  %s1, 7168, %s132, [#allocation6], 64, 64, 4
        $region16: #{tpu_custom_call.1} parent=11 // pred_fallthru
          _
        // Predicated region
        $region17: #{tpu_custom_call.1} parent=11 // pred_check
          %p138 = pneg %p84
        $region18: #{tpu_custom_call.1} parent=11 // pred_check_branch
          %140 = sbr.rel (%p138) target = $region20
        $region19: #{tpu_custom_call.1} parent=11 // pred_region
          %s142 = ssub.s32 128, 128
          %143 = vsyncadd [#allocation6], %s142
          %s145 = sshll.u32 [#allocation7], 4
          %s146 = int_to_ptr.vmem [resolvable:$true] %s145
          %148 = dma.hbm_to_vmem [thread:$0]  %s2, 128, %s146, [#allocation6]
        $region20: #{tpu_custom_call.1} parent=11 // pred_fallthru
          _
      $region12: #{tpu_custom_call.1} parent=5 // pred_fallthru
        _
      %p149 = scmp.lt.s32.totalorder %s16, 2
      // Predicated region
      $region21: #{tpu_custom_call.1} parent=5 // pred_check
        %p150 = pneg %p149
      $region22: #{tpu_custom_call.1} parent=5 // pred_check_branch
        %152 = sbr.rel (%p150) target = $region24
      $region23: #{tpu_custom_call.1} parent=5 // pred_region
        // Predicated region
        $region25: #{tpu_custom_call.1} parent=23 // pred_check
          %p153 = pneg %p36
        $region26: #{tpu_custom_call.1} parent=23 // pred_check_branch
          %155 = sbr.rel (%p153) target = $region28
        $region27: #{tpu_custom_call.1} parent=23 // pred_region
          %s156 = sand.u32 %s26, 1
          %s157 = scalar_lea.sflag [#allocation3], %s156
          %s158 = sand.u32 %s26, 1
          %s159 = smul.addr %s158, 64
          %s160 = scalar_lea.vmem [#allocation2], %s159
          %s161 = smul.u32 16, %s16
          %s163 = ssub.s32 1024, 1024
          %164 = vsyncadd %s157, %s163
          %s165 = smul.addr %s161, 64
          %s166 = scalar_lea.hbm %s0, %s165
          %s167 = sshll.u32 %s160, 4
          %s168 = int_to_ptr.vmem [resolvable:$true] %s167
          %173 = dma.hbm_to_vmem [thread:$0]  %s166, 1024, %s168, %s157, 64, 64, 4
        $region28: #{tpu_custom_call.1} parent=23 // pred_fallthru
          _
      $region24: #{tpu_custom_call.1} parent=5 // pred_fallthru
        _
      %p174 = scmp.le.s32.totalorder 1, %s16
      %p175 = scmp.lt.s32.totalorder %s16, 3
      %p176 = pnand %p174, %p175
      %p177 = pneg %p176
      // Predicated region
      $region29: #{tpu_custom_call.1} parent=5 // pred_check
        _
      $region30: #{tpu_custom_call.1} parent=5 // pred_check_branch
        %179 = sbr.rel (%p176) target = $region32
      $region31: #{tpu_custom_call.1} parent=5 // pred_region
        %s180 = ssub.s32 %s16, 1
        %s181 = sand.u32 %s29, 1
        %s182 = scalar_lea.sflag [#allocation3], %s181
        %s183 = sand.u32 %s29, 1
        %s184 = smul.addr %s183, 64
        %s185 = scalar_lea.vmem [#allocation2], %s184
        // Predicated region
        $region33: #{tpu_custom_call.1} parent=31 // pred_check
          %p186 = pneg %p42
        $region34: #{tpu_custom_call.1} parent=31 // pred_check_branch
          %188 = sbr.rel (%p186) target = $region36
        $region35: #{tpu_custom_call.1} parent=31 // pred_region
          %189 = dma.done %s182, 1024
        $region36: #{tpu_custom_call.1} parent=31 // pred_fallthru
          _
        // Predicated region
        $region37: #{tpu_custom_call.1} parent=31 // pred_check
          %p190 = pneg %p63
        $region38: #{tpu_custom_call.1} parent=31 // pred_check_branch
          %192 = sbr.rel (%p190) target = $region40
        $region39: #{tpu_custom_call.1} parent=31 // pred_region
          %193 = dma.done [#allocation6], 7168
        $region40: #{tpu_custom_call.1} parent=31 // pred_fallthru
          _
        // Predicated region
        $region41: #{tpu_custom_call.1} parent=31 // pred_check
          %p194 = pneg %p84
        $region42: #{tpu_custom_call.1} parent=31 // pred_check_branch
          %196 = sbr.rel (%p194) target = $region44
        $region43: #{tpu_custom_call.1} parent=31 // pred_region
          %197 = dma.done [#allocation6], 128
        $region44: #{tpu_custom_call.1} parent=31 // pred_fallthru
          _
        %s198 = sand.u32 %s29, 1
        %s199 = scalar_lea.sflag [#allocation3], %s198
        %s200 = sand.u32 %s29, 1
        %s201 = smul.addr %s200, 64
        %s202 = scalar_lea.vmem [#allocation2], %s201
        %p203 = pneg %p42
        %p204 = pneg %p39
        %p205 = pneg %p63
        %p206 = pneg %p60
        %p207 = pneg %p84
        %p208 = pneg %p81
        %p209 = pneg %p110
        %p210 = pneg %p107
        %s211 = sand.u32 %s97, 1
        %s212 = scalar_lea.sflag [#allocation4], %s211
        %s213 = sand.u32 %s97, 1
        %s214 = smul.addr %s213, 128
        %s215 = scalar_lea.vmem [#allocation8], %s214
        %s216 = smul.u32 16, %s21
        %s217 = smul.u32 16, %s21
        %v219 = vld [vmem:[#allocation7] sm:$0xff]
        %v220 = vld [vmem:[%s185] sm:$0xf]
        %v221 = vld [vmem:[%s185 + $0x4] sm:$0xf]
        %v222 = vld [vmem:[%s185 + $0x8] sm:$0xf]
        %v223 = vld [vmem:[%s185 + $0xc] sm:$0xf]
        %v224 = vld [vmem:[%s185 + $0x10] sm:$0xf]
        %v225 = vld [vmem:[%s185 + $0x14] sm:$0xf]
        %v226 = vld [vmem:[%s185 + $0x18] sm:$0xf]
        %v227 = vld [vmem:[%s185 + $0x1c] sm:$0xf]
        %v228 = vld [vmem:[%s185 + $0x20] sm:$0xf]
        %v229 = vld [vmem:[%s185 + $0x24] sm:$0xf]
        %v230 = vld [vmem:[%s185 + $0x28] sm:$0xf]
        %v231 = vld [vmem:[%s185 + $0x2c] sm:$0xf]
        %v232 = vld [vmem:[%s185 + $0x30] sm:$0xf]
        %v233 = vld [vmem:[%s185 + $0x34] sm:$0xf]
        %v234 = vld [vmem:[%s185 + $0x38] sm:$0xf]
        %v235 = vld [vmem:[%s185 + $0x3c] sm:$0xf]
        %v236 = vld [vmem:[#allocation5] sm:$0xf]
        %v237 = vld [vmem:[#allocation5 + $0x4] sm:$0xf]
        %v238 = vld [vmem:[#allocation5 + $0x8] sm:$0xf]
        %v239 = vld [vmem:[#allocation5 + $0xc] sm:$0xf]
        %v240 = vld [vmem:[#allocation5 + $0x10] sm:$0xf]
        %v241 = vld [vmem:[#allocation5 + $0x14] sm:$0xf]
        %v242 = vld [vmem:[#allocation5 + $0x18] sm:$0xf]
        %v243 = vld [vmem:[#allocation5 + $0x1c] sm:$0xf]
        %v244 = vld [vmem:[#allocation5 + $0x20] sm:$0xf]
        %v245 = vld [vmem:[#allocation5 + $0x24] sm:$0xf]
        %v246 = vld [vmem:[#allocation5 + $0x28] sm:$0xf]
        %v247 = vld [vmem:[#allocation5 + $0x2c] sm:$0xf]
        %v248 = vld [vmem:[#allocation5 + $0x30] sm:$0xf]
        %v249 = vld [vmem:[#allocation5 + $0x34] sm:$0xf]
        %v250 = vld [vmem:[#allocation5 + $0x38] sm:$0xf]
        %v251 = vld [vmem:[#allocation5 + $0x3c] sm:$0xf]
        %v252 = vlaneseq
        %v253 = vshrl.u32 %v252, 7
        %v254 = vsub.s32 0, %v253
        %v255 = vrot.slane %v219, %v254
        %v272 = vunpack.c.l.b16 %v220
        %v273 = vunpack.c.l.b16 %v221
        %v274 = vunpack.c.l.b16 %v222
        %v275 = vunpack.c.l.b16 %v223
        %v276 = vunpack.c.l.b16 %v224
        %v277 = vunpack.c.l.b16 %v225
        %v278 = vunpack.c.l.b16 %v226
        %v279 = vunpack.c.l.b16 %v227
        %v280 = vunpack.c.l.b16 %v228
        %v281 = vunpack.c.l.b16 %v229
        %v282 = vunpack.c.l.b16 %v230
        %v283 = vunpack.c.l.b16 %v231
        %v284 = vunpack.c.l.b16 %v232
        %v285 = vunpack.c.l.b16 %v233
        %v286 = vunpack.c.l.b16 %v234
        %v287 = vunpack.c.l.b16 %v235
        %v288 = vpack.c.b16 %v273, %v272
        %v289 = vpack.c.b16 %v275, %v274
        %v290 = vpack.c.b16 %v277, %v276
        %v291 = vpack.c.b16 %v279, %v278
        %v292 = vpack.c.b16 %v281, %v280
        %v293 = vpack.c.b16 %v283, %v282
        %v294 = vpack.c.b16 %v285, %v284
        %v295 = vpack.c.b16 %v287, %v286
        %v320 = vunpack.c.l.b16 %v236
        %v321 = vunpack.c.l.b16 %v237
        %v322 = vunpack.c.l.b16 %v238
        %v323 = vunpack.c.l.b16 %v239
        %v324 = vunpack.c.l.b16 %v240
        %v325 = vunpack.c.l.b16 %v241
        %v326 = vunpack.c.l.b16 %v242
        %v327 = vunpack.c.l.b16 %v243
        %v328 = vunpack.c.l.b16 %v244
        %v329 = vunpack.c.l.b16 %v245
        %v330 = vunpack.c.l.b16 %v246
        %v331 = vunpack.c.l.b16 %v247
        %v332 = vunpack.c.l.b16 %v248
        %v333 = vunpack.c.l.b16 %v249
        %v334 = vunpack.c.l.b16 %v250
        %v335 = vunpack.c.l.b16 %v251
        %v336 = vpack.c.b16 %v321, %v320
        %v337 = vpack.c.b16 %v323, %v322
        %v338 = vpack.c.b16 %v325, %v324
        %v339 = vpack.c.b16 %v327, %v326
        %v340 = vpack.c.b16 %v329, %v328
        %v341 = vpack.c.b16 %v331, %v330
        %v342 = vpack.c.b16 %v333, %v332
        %v343 = vpack.c.b16 %v335, %v334
        %352 = vmatprep.subr.bf16.mxu0 0
        %353 = vmatpush1.bf16.msra.mxu0 %v343
        %354 = vmatprep.subr.bf16.mxu0 0
        %355 = vmatpush1.bf16.msra.mxu0 %v342
        %356 = vmatprep.subr.bf16.mxu0 0
        %357 = vmatpush1.bf16.msra.mxu0 %v341
        %358 = vmatprep.subr.bf16.mxu0 0
        %359 = vmatpush1.bf16.msra.mxu0 %v340
        %360 = vmatprep.subr.bf16.mxu0 0
        %361 = vmatpush1.bf16.msra.mxu0 %v339
        %362 = vmatprep.subr.bf16.mxu0 0
        %363 = vmatpush1.bf16.msra.mxu0 %v338
        %364 = vmatprep.subr.bf16.mxu0 0
        %365 = vmatpush1.bf16.msra.mxu0 %v337
        %366 = vmatprep.subr.bf16.mxu0 0
        %367 = vmatpush1.bf16.msra.mxu0 %v336
        %368 = vmatprep.subr.bf16.mxu0 0
        %369 = vmatpush2.bf16.msra.mxu0 0
        %370 = vmatprep.subr.bf16.mxu0 0
        %371 = vmatpush2.bf16.msra.mxu0 0
        %372 = vmatprep.subr.bf16.mxu0 0
        %373 = vmatpush2.bf16.msra.mxu0 0
        %374 = vmatprep.subr.bf16.mxu0 0
        %375 = vmatpush2.bf16.msra.mxu0 0
        %376 = vmatprep.subr.bf16.mxu0 0
        %377 = vmatpush2.bf16.msra.mxu0 0
        %378 = vmatprep.subr.bf16.mxu0 0
        %379 = vmatpush2.bf16.msra.mxu0 0
        %380 = vmatprep.subr.bf16.mxu0 0
        %381 = vmatpush2.bf16.msra.mxu0 0
        %382 = vmatprep.subr.bf16.mxu0 0
        %383 = vmatpush2.bf16.msra.mxu0 0
        %384 = vmatprep.mubr.bf16.mxu0 0
        %385 = vmatmul.mubr.bf16.gmra.mxu0 %v288
        %v386 = vpop.f32.mrf.mxu0
        %v387 = vadd.f32 %v255, %v386
        %v388 = vpop.f32.mrf.mxu0
        %v389 = vpop.f32.mrf.mxu0
        %v390 = vadd.f32 %v255, %v389
        %v391 = vpop.f32.mrf.mxu0
        %392 = vmatprep.mubr.bf16.mxu0 0
        %393 = vmatmul.mubr.bf16.gmra.mxu0 %v289
        %v394 = vpop.f32.mrf.mxu0
        %v395 = vadd.f32 %v255, %v394
        %v396 = vpop.f32.mrf.mxu0
        %v397 = vpop.f32.mrf.mxu0
        %v398 = vadd.f32 %v255, %v397
        %v399 = vpop.f32.mrf.mxu0
        %400 = vmatprep.mubr.bf16.mxu0 0
        %401 = vmatmul.mubr.bf16.gmra.mxu0 %v290
        %v402 = vpop.f32.mrf.mxu0
        %v403 = vadd.f32 %v255, %v402
        %v404 = vpop.f32.mrf.mxu0
        %v405 = vpop.f32.mrf.mxu0
        %v406 = vadd.f32 %v255, %v405
        %v407 = vpop.f32.mrf.mxu0
        %408 = vmatprep.mubr.bf16.mxu0 0
        %409 = vmatmul.mubr.bf16.gmra.mxu0 %v291
        %v410 = vpop.f32.mrf.mxu0
        %v411 = vadd.f32 %v255, %v410
        %v412 = vpop.f32.mrf.mxu0
        %v413 = vpop.f32.mrf.mxu0
        %v414 = vadd.f32 %v255, %v413
        %v415 = vpop.f32.mrf.mxu0
        %416 = vmatprep.mubr.bf16.mxu0 0
        %417 = vmatmul.mubr.bf16.gmra.mxu0 %v292
        %v418 = vpop.f32.mrf.mxu0
        %v419 = vadd.f32 %v255, %v418
        %v420 = vpop.f32.mrf.mxu0
        %v421 = vpop.f32.mrf.mxu0
        %v422 = vadd.f32 %v255, %v421
        %v423 = vpop.f32.mrf.mxu0
        %424 = vmatprep.mubr.bf16.mxu0 0
        %425 = vmatmul.mubr.bf16.gmra.mxu0 %v293
        %v426 = vpop.f32.mrf.mxu0
        %v427 = vadd.f32 %v255, %v426
        %v428 = vpop.f32.mrf.mxu0
        %v429 = vpop.f32.mrf.mxu0
        %v430 = vadd.f32 %v255, %v429
        %v431 = vpop.f32.mrf.mxu0
        %432 = vmatprep.mubr.bf16.mxu0 0
        %433 = vmatmul.mubr.bf16.gmra.mxu0 %v294
        %v434 = vpop.f32.mrf.mxu0
        %v435 = vadd.f32 %v255, %v434
        %v436 = vpop.f32.mrf.mxu0
        %v437 = vpop.f32.mrf.mxu0
        %v438 = vadd.f32 %v255, %v437
        %v439 = vpop.f32.mrf.mxu0
        %440 = vmatprep.mubr.bf16.mxu0 0
        %441 = vmatmul.mubr.bf16.gmra.mxu0 %v295
        %v442 = vpop.f32.mrf.mxu0
        %v443 = vadd.f32 %v255, %v442
        %v444 = vpop.f32.mrf.mxu0
        %v445 = vpop.f32.mrf.mxu0
        %v446 = vadd.f32 %v255, %v445
        %v447 = vpop.f32.mrf.mxu0
        %448 = vdwg.mxu0
        %v449 = vmax.f32 %v387, 0.0
        %v450 = vmax.f32 %v390, 0.0
        %v451 = vmax.f32 %v395, 0.0
        %v452 = vmax.f32 %v398, 0.0
        %v453 = vmax.f32 %v403, 0.0
        %v454 = vmax.f32 %v406, 0.0
        %v455 = vmax.f32 %v411, 0.0
        %v456 = vmax.f32 %v414, 0.0
        %v457 = vmax.f32 %v419, 0.0
        %v458 = vmax.f32 %v422, 0.0
        %v459 = vmax.f32 %v427, 0.0
        %v460 = vmax.f32 %v430, 0.0
        %v461 = vmax.f32 %v435, 0.0
        %v462 = vmax.f32 %v438, 0.0
        %v463 = vmax.f32 %v443, 0.0
        %v464 = vmax.f32 %v446, 0.0
        %v465 = vpack.c.bf16 %v450, %v449
        %v466 = vpack.c.bf16 %v452, %v451
        %v467 = vpack.c.bf16 %v454, %v453
        %v468 = vpack.c.bf16 %v456, %v455
        %v469 = vpack.c.bf16 %v458, %v457
        %v470 = vpack.c.bf16 %v460, %v459
        %v471 = vpack.c.bf16 %v462, %v461
        %v472 = vpack.c.bf16 %v464, %v463
        %s473 = scalar_lea.vmem [#allocation5], 64
        %v474 = vld [vmem:[%s473] sm:$0xf]
        %v475 = vld [vmem:[%s473 + $0x4] sm:$0xf]
        %v476 = vld [vmem:[%s473 + $0x8] sm:$0xf]
        %v477 = vld [vmem:[%s473 + $0xc] sm:$0xf]
        %v478 = vld [vmem:[%s473 + $0x10] sm:$0xf]
        %v479 = vld [vmem:[%s473 + $0x14] sm:$0xf]
        %v480 = vld [vmem:[%s473 + $0x18] sm:$0xf]
        %v481 = vld [vmem:[%s473 + $0x1c] sm:$0xf]
        %v482 = vld [vmem:[%s473 + $0x20] sm:$0xf]
        %v483 = vld [vmem:[%s473 + $0x24] sm:$0xf]
        %v484 = vld [vmem:[%s473 + $0x28] sm:$0xf]
        %v485 = vld [vmem:[%s473 + $0x2c] sm:$0xf]
        %v486 = vld [vmem:[%s473 + $0x30] sm:$0xf]
        %v487 = vld [vmem:[%s473 + $0x34] sm:$0xf]
        %v488 = vld [vmem:[%s473 + $0x38] sm:$0xf]
        %v489 = vld [vmem:[%s473 + $0x3c] sm:$0xf]
        %v490 = vlaneseq
        %v491 = vshrl.u32 %v490, 7
        %v492 = vsub.s32 1, %v491
        %v493 = vrot.slane %v219, %v492
        %v510 = vunpack.c.l.b16 %v474
        %v511 = vunpack.c.l.b16 %v475
        %v512 = vunpack.c.l.b16 %v476
        %v513 = vunpack.c.l.b16 %v477
        %v514 = vunpack.c.l.b16 %v478
        %v515 = vunpack.c.l.b16 %v479
        %v516 = vunpack.c.l.b16 %v480
        %v517 = vunpack.c.l.b16 %v481
        %v518 = vunpack.c.l.b16 %v482
        %v519 = vunpack.c.l.b16 %v483
        %v520 = vunpack.c.l.b16 %v484
        %v521 = vunpack.c.l.b16 %v485
        %v522 = vunpack.c.l.b16 %v486
        %v523 = vunpack.c.l.b16 %v487
        %v524 = vunpack.c.l.b16 %v488
        %v525 = vunpack.c.l.b16 %v489
        %v526 = vpack.c.b16 %v511, %v510
        %v527 = vpack.c.b16 %v513, %v512
        %v528 = vpack.c.b16 %v515, %v514
        %v529 = vpack.c.b16 %v517, %v516
        %v530 = vpack.c.b16 %v519, %v518
        %v531 = vpack.c.b16 %v521, %v520
        %v532 = vpack.c.b16 %v523, %v522
        %v533 = vpack.c.b16 %v525, %v524
        %542 = vmatprep.subr.bf16.mxu0 0
        %543 = vmatpush1.bf16.msra.mxu0 %v533
        %544 = vmatprep.subr.bf16.mxu0 0
        %545 = vmatpush1.bf16.msra.mxu0 %v532
        %546 = vmatprep.subr.bf16.mxu0 0
        %547 = vmatpush1.bf16.msra.mxu0 %v531
        %548 = vmatprep.subr.bf16.mxu0 0
        %549 = vmatpush1.bf16.msra.mxu0 %v530
        %550 = vmatprep.subr.bf16.mxu0 0
        %551 = vmatpush1.bf16.msra.mxu0 %v529
        %552 = vmatprep.subr.bf16.mxu0 0
        %553 = vmatpush1.bf16.msra.mxu0 %v528
        %554 = vmatprep.subr.bf16.mxu0 0
        %555 = vmatpush1.bf16.msra.mxu0 %v527
        %556 = vmatprep.subr.bf16.mxu0 0
        %557 = vmatpush1.bf16.msra.mxu0 %v526
        %558 = vmatprep.subr.bf16.mxu0 0
        %559 = vmatpush2.bf16.msra.mxu0 0
        %560 = vmatprep.subr.bf16.mxu0 0
        %561 = vmatpush2.bf16.msra.mxu0 0
        %562 = vmatprep.subr.bf16.mxu0 0
        %563 = vmatpush2.bf16.msra.mxu0 0
        %564 = vmatprep.subr.bf16.mxu0 0
        %565 = vmatpush2.bf16.msra.mxu0 0
        %566 = vmatprep.subr.bf16.mxu0 0
        %567 = vmatpush2.bf16.msra.mxu0 0
        %568 = vmatprep.subr.bf16.mxu0 0
        %569 = vmatpush2.bf16.msra.mxu0 0
        %570 = vmatprep.subr.bf16.mxu0 0
        %571 = vmatpush2.bf16.msra.mxu0 0
        %572 = vmatprep.subr.bf16.mxu0 0
        %573 = vmatpush2.bf16.msra.mxu0 0
        %574 = vmatprep.mubr.bf16.mxu0 0
        %575 = vmatmul.mubr.bf16.gmra.mxu0 %v465
        %v576 = vpop.f32.mrf.mxu0
        %v577 = vadd.f32 %v493, %v576
        %v578 = vpop.f32.mrf.mxu0
        %v579 = vpop.f32.mrf.mxu0
        %v580 = vadd.f32 %v493, %v579
        %v581 = vpop.f32.mrf.mxu0
        %582 = vmatprep.mubr.bf16.mxu0 0
        %583 = vmatmul.mubr.bf16.gmra.mxu0 %v466
        %v584 = vpop.f32.mrf.mxu0
        %v585 = vadd.f32 %v493, %v584
        %v586 = vpop.f32.mrf.mxu0
        %v587 = vpop.f32.mrf.mxu0
        %v588 = vadd.f32 %v493, %v587
        %v589 = vpop.f32.mrf.mxu0
        %590 = vmatprep.mubr.bf16.mxu0 0
        %591 = vmatmul.mubr.bf16.gmra.mxu0 %v467
        %v592 = vpop.f32.mrf.mxu0
        %v593 = vadd.f32 %v493, %v592
        %v594 = vpop.f32.mrf.mxu0
        %v595 = vpop.f32.mrf.mxu0
        %v596 = vadd.f32 %v493, %v595
        %v597 = vpop.f32.mrf.mxu0
        %598 = vmatprep.mubr.bf16.mxu0 0
        %599 = vmatmul.mubr.bf16.gmra.mxu0 %v468
        %v600 = vpop.f32.mrf.mxu0
        %v601 = vadd.f32 %v493, %v600
        %v602 = vpop.f32.mrf.mxu0
        %v603 = vpop.f32.mrf.mxu0
        %v604 = vadd.f32 %v493, %v603
        %v605 = vpop.f32.mrf.mxu0
        %606 = vmatprep.mubr.bf16.mxu0 0
        %607 = vmatmul.mubr.bf16.gmra.mxu0 %v469
        %v608 = vpop.f32.mrf.mxu0
        %v609 = vadd.f32 %v493, %v608
        %v610 = vpop.f32.mrf.mxu0
        %v611 = vpop.f32.mrf.mxu0
        %v612 = vadd.f32 %v493, %v611
        %v613 = vpop.f32.mrf.mxu0
        %614 = vmatprep.mubr.bf16.mxu0 0
        %615 = vmatmul.mubr.bf16.gmra.mxu0 %v470
        %v616 = vpop.f32.mrf.mxu0
        %v617 = vadd.f32 %v493, %v616
        %v618 = vpop.f32.mrf.mxu0
        %v619 = vpop.f32.mrf.mxu0
        %v620 = vadd.f32 %v493, %v619
        %v621 = vpop.f32.mrf.mxu0
        %622 = vmatprep.mubr.bf16.mxu0 0
        %623 = vmatmul.mubr.bf16.gmra.mxu0 %v471
        %v624 = vpop.f32.mrf.mxu0
        %v625 = vadd.f32 %v493, %v624
        %v626 = vpop.f32.mrf.mxu0
        %v627 = vpop.f32.mrf.mxu0
        %v628 = vadd.f32 %v493, %v627
        %v629 = vpop.f32.mrf.mxu0
        %630 = vmatprep.mubr.bf16.mxu0 0
        %631 = vmatmul.mubr.bf16.gmra.mxu0 %v472
        %v632 = vpop.f32.mrf.mxu0
        %v633 = vadd.f32 %v493, %v632
        %v634 = vpop.f32.mrf.mxu0
        %v635 = vpop.f32.mrf.mxu0
        %v636 = vadd.f32 %v493, %v635
        %v637 = vpop.f32.mrf.mxu0
        %638 = vdwg.mxu0
        %v639 = vmax.f32 %v577, 0.0
        %v640 = vmax.f32 %v580, 0.0
        %v641 = vmax.f32 %v585, 0.0
        %v642 = vmax.f32 %v588, 0.0
        %v643 = vmax.f32 %v593, 0.0
        %v644 = vmax.f32 %v596, 0.0
        %v645 = vmax.f32 %v601, 0.0
        %v646 = vmax.f32 %v604, 0.0
        %v647 = vmax.f32 %v609, 0.0
        %v648 = vmax.f32 %v612, 0.0
        %v649 = vmax.f32 %v617, 0.0
        %v650 = vmax.f32 %v620, 0.0
        %v651 = vmax.f32 %v625, 0.0
        %v652 = vmax.f32 %v628, 0.0
        %v653 = vmax.f32 %v633, 0.0
        %v654 = vmax.f32 %v636, 0.0
        %v655 = vpack.c.bf16 %v640, %v639
        %v656 = vpack.c.bf16 %v642, %v641
        %v657 = vpack.c.bf16 %v644, %v643
        %v658 = vpack.c.bf16 %v646, %v645
        %v659 = vpack.c.bf16 %v648, %v647
        %v660 = vpack.c.bf16 %v650, %v649
        %v661 = vpack.c.bf16 %v652, %v651
        %v662 = vpack.c.bf16 %v654, %v653
        %s663 = scalar_lea.vmem [#allocation5], 128
        %v664 = vld [vmem:[%s663] sm:$0xf]
        %v665 = vld [vmem:[%s663 + $0x4] sm:$0xf]
        %v666 = vld [vmem:[%s663 + $0x8] sm:$0xf]
        %v667 = vld [vmem:[%s663 + $0xc] sm:$0xf]
        %v668 = vld [vmem:[%s663 + $0x10] sm:$0xf]
        %v669 = vld [vmem:[%s663 + $0x14] sm:$0xf]
        %v670 = vld [vmem:[%s663 + $0x18] sm:$0xf]
        %v671 = vld [vmem:[%s663 + $0x1c] sm:$0xf]
        %v672 = vld [vmem:[%s663 + $0x20] sm:$0xf]
        %v673 = vld [vmem:[%s663 + $0x24] sm:$0xf]
        %v674 = vld [vmem:[%s663 + $0x28] sm:$0xf]
        %v675 = vld [vmem:[%s663 + $0x2c] sm:$0xf]
        %v676 = vld [vmem:[%s663 + $0x30] sm:$0xf]
        %v677 = vld [vmem:[%s663 + $0x34] sm:$0xf]
        %v678 = vld [vmem:[%s663 + $0x38] sm:$0xf]
        %v679 = vld [vmem:[%s663 + $0x3c] sm:$0xf]
        %v680 = vlaneseq
        %v681 = vshrl.u32 %v680, 7
        %v682 = vsub.s32 2, %v681
        %v683 = vrot.slane %v219, %v682
        %v700 = vunpack.c.l.b16 %v664
        %v701 = vunpack.c.l.b16 %v665
        %v702 = vunpack.c.l.b16 %v666
        %v703 = vunpack.c.l.b16 %v667
        %v704 = vunpack.c.l.b16 %v668
        %v705 = vunpack.c.l.b16 %v669
        %v706 = vunpack.c.l.b16 %v670
        %v707 = vunpack.c.l.b16 %v671
        %v708 = vunpack.c.l.b16 %v672
        %v709 = vunpack.c.l.b16 %v673
        %v710 = vunpack.c.l.b16 %v674
        %v711 = vunpack.c.l.b16 %v675
        %v712 = vunpack.c.l.b16 %v676
        %v713 = vunpack.c.l.b16 %v677
        %v714 = vunpack.c.l.b16 %v678
        %v715 = vunpack.c.l.b16 %v679
        %v716 = vpack.c.b16 %v701, %v700
        %v717 = vpack.c.b16 %v703, %v702
        %v718 = vpack.c.b16 %v705, %v704
        %v719 = vpack.c.b16 %v707, %v706
        %v720 = vpack.c.b16 %v709, %v708
        %v721 = vpack.c.b16 %v711, %v710
        %v722 = vpack.c.b16 %v713, %v712
        %v723 = vpack.c.b16 %v715, %v714
        %732 = vmatprep.subr.bf16.mxu0 0
        %733 = vmatpush1.bf16.msra.mxu0 %v723
        %734 = vmatprep.subr.bf16.mxu0 0
        %735 = vmatpush1.bf16.msra.mxu0 %v722
        %736 = vmatprep.subr.bf16.mxu0 0
        %737 = vmatpush1.bf16.msra.mxu0 %v721
        %738 = vmatprep.subr.bf16.mxu0 0
        %739 = vmatpush1.bf16.msra.mxu0 %v720
        %740 = vmatprep.subr.bf16.mxu0 0
        %741 = vmatpush1.bf16.msra.mxu0 %v719
        %742 = vmatprep.subr.bf16.mxu0 0
        %743 = vmatpush1.bf16.msra.mxu0 %v718
        %744 = vmatprep.subr.bf16.mxu0 0
        %745 = vmatpush1.bf16.msra.mxu0 %v717
        %746 = vmatprep.subr.bf16.mxu0 0
        %747 = vmatpush1.bf16.msra.mxu0 %v716
        %748 = vmatprep.subr.bf16.mxu0 0
        %749 = vmatpush2.bf16.msra.mxu0 0
        %750 = vmatprep.subr.bf16.mxu0 0
        %751 = vmatpush2.bf16.msra.mxu0 0
        %752 = vmatprep.subr.bf16.mxu0 0
        %753 = vmatpush2.bf16.msra.mxu0 0
        %754 = vmatprep.subr.bf16.mxu0 0
        %755 = vmatpush2.bf16.msra.mxu0 0
        %756 = vmatprep.subr.bf16.mxu0 0
        %757 = vmatpush2.bf16.msra.mxu0 0
        %758 = vmatprep.subr.bf16.mxu0 0
        %759 = vmatpush2.bf16.msra.mxu0 0
        %760 = vmatprep.subr.bf16.mxu0 0
        %761 = vmatpush2.bf16.msra.mxu0 0
        %762 = vmatprep.subr.bf16.mxu0 0
        %763 = vmatpush2.bf16.msra.mxu0 0
        %764 = vmatprep.mubr.bf16.mxu0 0
        %765 = vmatmul.mubr.bf16.gmra.mxu0 %v655
        %v766 = vpop.f32.mrf.mxu0
        %v767 = vadd.f32 %v683, %v766
        %v768 = vpop.f32.mrf.mxu0
        %v769 = vpop.f32.mrf.mxu0
        %v770 = vadd.f32 %v683, %v769
        %v771 = vpop.f32.mrf.mxu0
        %772 = vmatprep.mubr.bf16.mxu0 0
        %773 = vmatmul.mubr.bf16.gmra.mxu0 %v656
        %v774 = vpop.f32.mrf.mxu0
        %v775 = vadd.f32 %v683, %v774
        %v776 = vpop.f32.mrf.mxu0
        %v777 = vpop.f32.mrf.mxu0
        %v778 = vadd.f32 %v683, %v777
        %v779 = vpop.f32.mrf.mxu0
        %780 = vmatprep.mubr.bf16.mxu0 0
        %781 = vmatmul.mubr.bf16.gmra.mxu0 %v657
        %v782 = vpop.f32.mrf.mxu0
        %v783 = vadd.f32 %v683, %v782
        %v784 = vpop.f32.mrf.mxu0
        %v785 = vpop.f32.mrf.mxu0
        %v786 = vadd.f32 %v683, %v785
        %v787 = vpop.f32.mrf.mxu0
        %788 = vmatprep.mubr.bf16.mxu0 0
        %789 = vmatmul.mubr.bf16.gmra.mxu0 %v658
        %v790 = vpop.f32.mrf.mxu0
        %v791 = vadd.f32 %v683, %v790
        %v792 = vpop.f32.mrf.mxu0
        %v793 = vpop.f32.mrf.mxu0
        %v794 = vadd.f32 %v683, %v793
        %v795 = vpop.f32.mrf.mxu0
        %796 = vmatprep.mubr.bf16.mxu0 0
        %797 = vmatmul.mubr.bf16.gmra.mxu0 %v659
        %v798 = vpop.f32.mrf.mxu0
        %v799 = vadd.f32 %v683, %v798
        %v800 = vpop.f32.mrf.mxu0
        %v801 = vpop.f32.mrf.mxu0
        %v802 = vadd.f32 %v683, %v801
        %v803 = vpop.f32.mrf.mxu0
        %804 = vmatprep.mubr.bf16.mxu0 0
        %805 = vmatmul.mubr.bf16.gmra.mxu0 %v660
        %v806 = vpop.f32.mrf.mxu0
        %v807 = vadd.f32 %v683, %v806
        %v808 = vpop.f32.mrf.mxu0
        %v809 = vpop.f32.mrf.mxu0
        %v810 = vadd.f32 %v683, %v809
        %v811 = vpop.f32.mrf.mxu0
        %812 = vmatprep.mubr.bf16.mxu0 0
        %813 = vmatmul.mubr.bf16.gmra.mxu0 %v661
        %v814 = vpop.f32.mrf.mxu0
        %v815 = vadd.f32 %v683, %v814
        %v816 = vpop.f32.mrf.mxu0
        %v817 = vpop.f32.mrf.mxu0
        %v818 = vadd.f32 %v683, %v817
        %v819 = vpop.f32.mrf.mxu0
        %820 = vmatprep.mubr.bf16.mxu0 0
        %821 = vmatmul.mubr.bf16.gmra.mxu0 %v662
        %v822 = vpop.f32.mrf.mxu0
        %v823 = vadd.f32 %v683, %v822
        %v824 = vpop.f32.mrf.mxu0
        %v825 = vpop.f32.mrf.mxu0
        %v826 = vadd.f32 %v683, %v825
        %v827 = vpop.f32.mrf.mxu0
        %828 = vdwg.mxu0
        %v829 = vmax.f32 %v767, 0.0
        %v830 = vmax.f32 %v770, 0.0
        %v831 = vmax.f32 %v775, 0.0
        %v832 = vmax.f32 %v778, 0.0
        %v833 = vmax.f32 %v783, 0.0
        %v834 = vmax.f32 %v786, 0.0
        %v835 = vmax.f32 %v791, 0.0
        %v836 = vmax.f32 %v794, 0.0
        %v837 = vmax.f32 %v799, 0.0
        %v838 = vmax.f32 %v802, 0.0
        %v839 = vmax.f32 %v807, 0.0
        %v840 = vmax.f32 %v810, 0.0
        %v841 = vmax.f32 %v815, 0.0
        %v842 = vmax.f32 %v818, 0.0
        %v843 = vmax.f32 %v823, 0.0
        %v844 = vmax.f32 %v826, 0.0
        %v845 = vpack.c.bf16 %v830, %v829
        %v846 = vpack.c.bf16 %v832, %v831
        %v847 = vpack.c.bf16 %v834, %v833
        %v848 = vpack.c.bf16 %v836, %v835
        %v849 = vpack.c.bf16 %v838, %v837
        %v850 = vpack.c.bf16 %v840, %v839
        %v851 = vpack.c.bf16 %v842, %v841
        %v852 = vpack.c.bf16 %v844, %v843
        %s853 = scalar_lea.vmem [#allocation5], 192
        %v854 = vld [vmem:[%s853] sm:$0xf]
        %v855 = vld [vmem:[%s853 + $0x4] sm:$0xf]
        %v856 = vld [vmem:[%s853 + $0x8] sm:$0xf]
        %v857 = vld [vmem:[%s853 + $0xc] sm:$0xf]
        %v858 = vld [vmem:[%s853 + $0x10] sm:$0xf]
        %v859 = vld [vmem:[%s853 + $0x14] sm:$0xf]
        %v860 = vld [vmem:[%s853 + $0x18] sm:$0xf]
        %v861 = vld [vmem:[%s853 + $0x1c] sm:$0xf]
        %v862 = vld [vmem:[%s853 + $0x20] sm:$0xf]
        %v863 = vld [vmem:[%s853 + $0x24] sm:$0xf]
        %v864 = vld [vmem:[%s853 + $0x28] sm:$0xf]
        %v865 = vld [vmem:[%s853 + $0x2c] sm:$0xf]
        %v866 = vld [vmem:[%s853 + $0x30] sm:$0xf]
        %v867 = vld [vmem:[%s853 + $0x34] sm:$0xf]
        %v868 = vld [vmem:[%s853 + $0x38] sm:$0xf]
        %v869 = vld [vmem:[%s853 + $0x3c] sm:$0xf]
        %v870 = vlaneseq
        %v871 = vshrl.u32 %v870, 7
        %v872 = vsub.s32 3, %v871
        %v873 = vrot.slane %v219, %v872
        %v890 = vunpack.c.l.b16 %v854
        %v891 = vunpack.c.l.b16 %v855
        %v892 = vunpack.c.l.b16 %v856
        %v893 = vunpack.c.l.b16 %v857
        %v894 = vunpack.c.l.b16 %v858
        %v895 = vunpack.c.l.b16 %v859
        %v896 = vunpack.c.l.b16 %v860
        %v897 = vunpack.c.l.b16 %v861
        %v898 = vunpack.c.l.b16 %v862
        %v899 = vunpack.c.l.b16 %v863
        %v900 = vunpack.c.l.b16 %v864
        %v901 = vunpack.c.l.b16 %v865
        %v902 = vunpack.c.l.b16 %v866
        %v903 = vunpack.c.l.b16 %v867
        %v904 = vunpack.c.l.b16 %v868
        %v905 = vunpack.c.l.b16 %v869
        %v906 = vpack.c.b16 %v891, %v890
        %v907 = vpack.c.b16 %v893, %v892
        %v908 = vpack.c.b16 %v895, %v894
        %v909 = vpack.c.b16 %v897, %v896
        %v910 = vpack.c.b16 %v899, %v898
        %v911 = vpack.c.b16 %v901, %v900
        %v912 = vpack.c.b16 %v903, %v902
        %v913 = vpack.c.b16 %v905, %v904
        %922 = vmatprep.subr.bf16.mxu0 0
        %923 = vmatpush1.bf16.msra.mxu0 %v913
        %924 = vmatprep.subr.bf16.mxu0 0
        %925 = vmatpush1.bf16.msra.mxu0 %v912
        %926 = vmatprep.subr.bf16.mxu0 0
        %927 = vmatpush1.bf16.msra.mxu0 %v911
        %928 = vmatprep.subr.bf16.mxu0 0
        %929 = vmatpush1.bf16.msra.mxu0 %v910
        %930 = vmatprep.subr.bf16.mxu0 0
        %931 = vmatpush1.bf16.msra.mxu0 %v909
        %932 = vmatprep.subr.bf16.mxu0 0
        %933 = vmatpush1.bf16.msra.mxu0 %v908
        %934 = vmatprep.subr.bf16.mxu0 0
        %935 = vmatpush1.bf16.msra.mxu0 %v907
        %936 = vmatprep.subr.bf16.mxu0 0
        %937 = vmatpush1.bf16.msra.mxu0 %v906
        %938 = vmatprep.subr.bf16.mxu0 0
        %939 = vmatpush2.bf16.msra.mxu0 0
        %940 = vmatprep.subr.bf16.mxu0 0
        %941 = vmatpush2.bf16.msra.mxu0 0
        %942 = vmatprep.subr.bf16.mxu0 0
        %943 = vmatpush2.bf16.msra.mxu0 0
        %944 = vmatprep.subr.bf16.mxu0 0
        %945 = vmatpush2.bf16.msra.mxu0 0
        %946 = vmatprep.subr.bf16.mxu0 0
        %947 = vmatpush2.bf16.msra.mxu0 0
        %948 = vmatprep.subr.bf16.mxu0 0
        %949 = vmatpush2.bf16.msra.mxu0 0
        %950 = vmatprep.subr.bf16.mxu0 0
        %951 = vmatpush2.bf16.msra.mxu0 0
        %952 = vmatprep.subr.bf16.mxu0 0
        %953 = vmatpush2.bf16.msra.mxu0 0
        %954 = vmatprep.mubr.bf16.mxu0 0
        %955 = vmatmul.mubr.bf16.gmra.mxu0 %v845
        %v956 = vpop.f32.mrf.mxu0
        %v957 = vadd.f32 %v873, %v956
        %v958 = vpop.f32.mrf.mxu0
        %v959 = vpop.f32.mrf.mxu0
        %v960 = vadd.f32 %v873, %v959
        %v961 = vpop.f32.mrf.mxu0
        %962 = vmatprep.mubr.bf16.mxu0 0
        %963 = vmatmul.mubr.bf16.gmra.mxu0 %v846
        %v964 = vpop.f32.mrf.mxu0
        %v965 = vadd.f32 %v873, %v964
        %v966 = vpop.f32.mrf.mxu0
        %v967 = vpop.f32.mrf.mxu0
        %v968 = vadd.f32 %v873, %v967
        %v969 = vpop.f32.mrf.mxu0
        %970 = vmatprep.mubr.bf16.mxu0 0
        %971 = vmatmul.mubr.bf16.gmra.mxu0 %v847
        %v972 = vpop.f32.mrf.mxu0
        %v973 = vadd.f32 %v873, %v972
        %v974 = vpop.f32.mrf.mxu0
        %v975 = vpop.f32.mrf.mxu0
        %v976 = vadd.f32 %v873, %v975
        %v977 = vpop.f32.mrf.mxu0
        %978 = vmatprep.mubr.bf16.mxu0 0
        %979 = vmatmul.mubr.bf16.gmra.mxu0 %v848
        %v980 = vpop.f32.mrf.mxu0
        %v981 = vadd.f32 %v873, %v980
        %v982 = vpop.f32.mrf.mxu0
        %v983 = vpop.f32.mrf.mxu0
        %v984 = vadd.f32 %v873, %v983
        %v985 = vpop.f32.mrf.mxu0
        %986 = vmatprep.mubr.bf16.mxu0 0
        %987 = vmatmul.mubr.bf16.gmra.mxu0 %v849
        %v988 = vpop.f32.mrf.mxu0
        %v989 = vadd.f32 %v873, %v988
        %v990 = vpop.f32.mrf.mxu0
        %v991 = vpop.f32.mrf.mxu0
        %v992 = vadd.f32 %v873, %v991
        %v993 = vpop.f32.mrf.mxu0
        %994 = vmatprep.mubr.bf16.mxu0 0
        %995 = vmatmul.mubr.bf16.gmra.mxu0 %v850
        %v996 = vpop.f32.mrf.mxu0
        %v997 = vadd.f32 %v873, %v996
        %v998 = vpop.f32.mrf.mxu0
        %v999 = vpop.f32.mrf.mxu0
        %v1000 = vadd.f32 %v873, %v999
        %v1001 = vpop.f32.mrf.mxu0
        %1002 = vmatprep.mubr.bf16.mxu0 0
        %1003 = vmatmul.mubr.bf16.gmra.mxu0 %v851
        %v1004 = vpop.f32.mrf.mxu0
        %v1005 = vadd.f32 %v873, %v1004
        %v1006 = vpop.f32.mrf.mxu0
        %v1007 = vpop.f32.mrf.mxu0
        %v1008 = vadd.f32 %v873, %v1007
        %v1009 = vpop.f32.mrf.mxu0
        %1010 = vmatprep.mubr.bf16.mxu0 0
        %1011 = vmatmul.mubr.bf16.gmra.mxu0 %v852
        %v1012 = vpop.f32.mrf.mxu0
        %v1013 = vadd.f32 %v873, %v1012
        %v1014 = vpop.f32.mrf.mxu0
        %v1015 = vpop.f32.mrf.mxu0
        %v1016 = vadd.f32 %v873, %v1015
        %v1017 = vpop.f32.mrf.mxu0
        %1018 = vdwg.mxu0
        %v1019 = vmax.f32 %v957, 0.0
        %v1020 = vmax.f32 %v960, 0.0
        %v1021 = vmax.f32 %v965, 0.0
        %v1022 = vmax.f32 %v968, 0.0
        %v1023 = vmax.f32 %v973, 0.0
        %v1024 = vmax.f32 %v976, 0.0
        %v1025 = vmax.f32 %v981, 0.0
        %v1026 = vmax.f32 %v984, 0.0
        %v1027 = vmax.f32 %v989, 0.0
        %v1028 = vmax.f32 %v992, 0.0
        %v1029 = vmax.f32 %v997, 0.0
        %v1030 = vmax.f32 %v1000, 0.0
        %v1031 = vmax.f32 %v1005, 0.0
        %v1032 = vmax.f32 %v1008, 0.0
        %v1033 = vmax.f32 %v1013, 0.0
        %v1034 = vmax.f32 %v1016, 0.0
        %v1035 = vadd.f32 %v1019, %v829
        %v1036 = vadd.f32 %v1020, %v830
        %v1037 = vadd.f32 %v1021, %v831
        %v1038 = vadd.f32 %v1022, %v832
        %v1039 = vadd.f32 %v1023, %v833
        %v1040 = vadd.f32 %v1024, %v834
        %v1041 = vadd.f32 %v1025, %v835
        %v1042 = vadd.f32 %v1026, %v836
        %v1043 = vadd.f32 %v1027, %v837
        %v1044 = vadd.f32 %v1028, %v838
        %v1045 = vadd.f32 %v1029, %v839
        %v1046 = vadd.f32 %v1030, %v840
        %v1047 = vadd.f32 %v1031, %v841
        %v1048 = vadd.f32 %v1032, %v842
        %v1049 = vadd.f32 %v1033, %v843
        %v1050 = vadd.f32 %v1034, %v844
        %v1051 = vpack.c.bf16 %v1036, %v1035
        %v1052 = vpack.c.bf16 %v1038, %v1037
        %v1053 = vpack.c.bf16 %v1040, %v1039
        %v1054 = vpack.c.bf16 %v1042, %v1041
        %v1055 = vpack.c.bf16 %v1044, %v1043
        %v1056 = vpack.c.bf16 %v1046, %v1045
        %v1057 = vpack.c.bf16 %v1048, %v1047
        %v1058 = vpack.c.bf16 %v1050, %v1049
        %s1059 = scalar_lea.vmem [#allocation5], 256
        %v1060 = vld [vmem:[%s1059] sm:$0xf]
        %v1061 = vld [vmem:[%s1059 + $0x4] sm:$0xf]
        %v1062 = vld [vmem:[%s1059 + $0x8] sm:$0xf]
        %v1063 = vld [vmem:[%s1059 + $0xc] sm:$0xf]
        %v1064 = vld [vmem:[%s1059 + $0x10] sm:$0xf]
        %v1065 = vld [vmem:[%s1059 + $0x14] sm:$0xf]
        %v1066 = vld [vmem:[%s1059 + $0x18] sm:$0xf]
        %v1067 = vld [vmem:[%s1059 + $0x1c] sm:$0xf]
        %v1068 = vld [vmem:[%s1059 + $0x20] sm:$0xf]
        %v1069 = vld [vmem:[%s1059 + $0x24] sm:$0xf]
        %v1070 = vld [vmem:[%s1059 + $0x28] sm:$0xf]
        %v1071 = vld [vmem:[%s1059 + $0x2c] sm:$0xf]
        %v1072 = vld [vmem:[%s1059 + $0x30] sm:$0xf]
        %v1073 = vld [vmem:[%s1059 + $0x34] sm:$0xf]
        %v1074 = vld [vmem:[%s1059 + $0x38] sm:$0xf]
        %v1075 = vld [vmem:[%s1059 + $0x3c] sm:$0xf]
        %v1076 = vlaneseq
        %v1077 = vshrl.u32 %v1076, 7
        %v1078 = vsub.s32 4, %v1077
        %v1079 = vrot.slane %v219, %v1078
        %v1096 = vunpack.c.l.b16 %v1060
        %v1097 = vunpack.c.l.b16 %v1061
        %v1098 = vunpack.c.l.b16 %v1062
        %v1099 = vunpack.c.l.b16 %v1063
        %v1100 = vunpack.c.l.b16 %v1064
        %v1101 = vunpack.c.l.b16 %v1065
        %v1102 = vunpack.c.l.b16 %v1066
        %v1103 = vunpack.c.l.b16 %v1067
        %v1104 = vunpack.c.l.b16 %v1068
        %v1105 = vunpack.c.l.b16 %v1069
        %v1106 = vunpack.c.l.b16 %v1070
        %v1107 = vunpack.c.l.b16 %v1071
        %v1108 = vunpack.c.l.b16 %v1072
        %v1109 = vunpack.c.l.b16 %v1073
        %v1110 = vunpack.c.l.b16 %v1074
        %v1111 = vunpack.c.l.b16 %v1075
        %v1112 = vpack.c.b16 %v1097, %v1096
        %v1113 = vpack.c.b16 %v1099, %v1098
        %v1114 = vpack.c.b16 %v1101, %v1100
        %v1115 = vpack.c.b16 %v1103, %v1102
        %v1116 = vpack.c.b16 %v1105, %v1104
        %v1117 = vpack.c.b16 %v1107, %v1106
        %v1118 = vpack.c.b16 %v1109, %v1108
        %v1119 = vpack.c.b16 %v1111, %v1110
        %1128 = vmatprep.subr.bf16.mxu0 0
        %1129 = vmatpush1.bf16.msra.mxu0 %v1119
        %1130 = vmatprep.subr.bf16.mxu0 0
        %1131 = vmatpush1.bf16.msra.mxu0 %v1118
        %1132 = vmatprep.subr.bf16.mxu0 0
        %1133 = vmatpush1.bf16.msra.mxu0 %v1117
        %1134 = vmatprep.subr.bf16.mxu0 0
        %1135 = vmatpush1.bf16.msra.mxu0 %v1116
        %1136 = vmatprep.subr.bf16.mxu0 0
        %1137 = vmatpush1.bf16.msra.mxu0 %v1115
        %1138 = vmatprep.subr.bf16.mxu0 0
        %1139 = vmatpush1.bf16.msra.mxu0 %v1114
        %1140 = vmatprep.subr.bf16.mxu0 0
        %1141 = vmatpush1.bf16.msra.mxu0 %v1113
        %1142 = vmatprep.subr.bf16.mxu0 0
        %1143 = vmatpush1.bf16.msra.mxu0 %v1112
        %1144 = vmatprep.subr.bf16.mxu0 0
        %1145 = vmatpush2.bf16.msra.mxu0 0
        %1146 = vmatprep.subr.bf16.mxu0 0
        %1147 = vmatpush2.bf16.msra.mxu0 0
        %1148 = vmatprep.subr.bf16.mxu0 0
        %1149 = vmatpush2.bf16.msra.mxu0 0
        %1150 = vmatprep.subr.bf16.mxu0 0
        %1151 = vmatpush2.bf16.msra.mxu0 0
        %1152 = vmatprep.subr.bf16.mxu0 0
        %1153 = vmatpush2.bf16.msra.mxu0 0
        %1154 = vmatprep.subr.bf16.mxu0 0
        %1155 = vmatpush2.bf16.msra.mxu0 0
        %1156 = vmatprep.subr.bf16.mxu0 0
        %1157 = vmatpush2.bf16.msra.mxu0 0
        %1158 = vmatprep.subr.bf16.mxu0 0
        %1159 = vmatpush2.bf16.msra.mxu0 0
        %1160 = vmatprep.mubr.bf16.mxu0 0
        %1161 = vmatmul.mubr.bf16.gmra.mxu0 %v1051
        %v1162 = vpop.f32.mrf.mxu0
        %v1163 = vadd.f32 %v1079, %v1162
        %v1164 = vpop.f32.mrf.mxu0
        %v1165 = vpop.f32.mrf.mxu0
        %v1166 = vadd.f32 %v1079, %v1165
        %v1167 = vpop.f32.mrf.mxu0
        %1168 = vmatprep.mubr.bf16.mxu0 0
        %1169 = vmatmul.mubr.bf16.gmra.mxu0 %v1052
        %v1170 = vpop.f32.mrf.mxu0
        %v1171 = vadd.f32 %v1079, %v1170
        %v1172 = vpop.f32.mrf.mxu0
        %v1173 = vpop.f32.mrf.mxu0
        %v1174 = vadd.f32 %v1079, %v1173
        %v1175 = vpop.f32.mrf.mxu0
        %1176 = vmatprep.mubr.bf16.mxu0 0
        %1177 = vmatmul.mubr.bf16.gmra.mxu0 %v1053
        %v1178 = vpop.f32.mrf.mxu0
        %v1179 = vadd.f32 %v1079, %v1178
        %v1180 = vpop.f32.mrf.mxu0
        %v1181 = vpop.f32.mrf.mxu0
        %v1182 = vadd.f32 %v1079, %v1181
        %v1183 = vpop.f32.mrf.mxu0
        %1184 = vmatprep.mubr.bf16.mxu0 0
        %1185 = vmatmul.mubr.bf16.gmra.mxu0 %v1054
        %v1186 = vpop.f32.mrf.mxu0
        %v1187 = vadd.f32 %v1079, %v1186
        %v1188 = vpop.f32.mrf.mxu0
        %v1189 = vpop.f32.mrf.mxu0
        %v1190 = vadd.f32 %v1079, %v1189
        %v1191 = vpop.f32.mrf.mxu0
        %1192 = vmatprep.mubr.bf16.mxu0 0
        %1193 = vmatmul.mubr.bf16.gmra.mxu0 %v1055
        %v1194 = vpop.f32.mrf.mxu0
        %v1195 = vadd.f32 %v1079, %v1194
        %v1196 = vpop.f32.mrf.mxu0
        %v1197 = vpop.f32.mrf.mxu0
        %v1198 = vadd.f32 %v1079, %v1197
        %v1199 = vpop.f32.mrf.mxu0
        %1200 = vmatprep.mubr.bf16.mxu0 0
        %1201 = vmatmul.mubr.bf16.gmra.mxu0 %v1056
        %v1202 = vpop.f32.mrf.mxu0
        %v1203 = vadd.f32 %v1079, %v1202
        %v1204 = vpop.f32.mrf.mxu0
        %v1205 = vpop.f32.mrf.mxu0
        %v1206 = vadd.f32 %v1079, %v1205
        %v1207 = vpop.f32.mrf.mxu0
        %1208 = vmatprep.mubr.bf16.mxu0 0
        %1209 = vmatmul.mubr.bf16.gmra.mxu0 %v1057
        %v1210 = vpop.f32.mrf.mxu0
        %v1211 = vadd.f32 %v1079, %v1210
        %v1212 = vpop.f32.mrf.mxu0
        %v1213 = vpop.f32.mrf.mxu0
        %v1214 = vadd.f32 %v1079, %v1213
        %v1215 = vpop.f32.mrf.mxu0
        %1216 = vmatprep.mubr.bf16.mxu0 0
        %1217 = vmatmul.mubr.bf16.gmra.mxu0 %v1058
        %v1218 = vpop.f32.mrf.mxu0
        %v1219 = vadd.f32 %v1079, %v1218
        %v1220 = vpop.f32.mrf.mxu0
        %v1221 = vpop.f32.mrf.mxu0
        %v1222 = vadd.f32 %v1079, %v1221
        %v1223 = vpop.f32.mrf.mxu0
        %1224 = vdwg.mxu0
        %v1225 = vmax.f32 %v1163, 0.0
        %v1226 = vmax.f32 %v1166, 0.0
        %v1227 = vmax.f32 %v1171, 0.0
        %v1228 = vmax.f32 %v1174, 0.0
        %v1229 = vmax.f32 %v1179, 0.0
        %v1230 = vmax.f32 %v1182, 0.0
        %v1231 = vmax.f32 %v1187, 0.0
        %v1232 = vmax.f32 %v1190, 0.0
        %v1233 = vmax.f32 %v1195, 0.0
        %v1234 = vmax.f32 %v1198, 0.0
        %v1235 = vmax.f32 %v1203, 0.0
        %v1236 = vmax.f32 %v1206, 0.0
        %v1237 = vmax.f32 %v1211, 0.0
        %v1238 = vmax.f32 %v1214, 0.0
        %v1239 = vmax.f32 %v1219, 0.0
        %v1240 = vmax.f32 %v1222, 0.0
        %v1241 = vadd.f32 %v1225, %v639
        %v1242 = vadd.f32 %v1226, %v640
        %v1243 = vadd.f32 %v1227, %v641
        %v1244 = vadd.f32 %v1228, %v642
        %v1245 = vadd.f32 %v1229, %v643
        %v1246 = vadd.f32 %v1230, %v644
        %v1247 = vadd.f32 %v1231, %v645
        %v1248 = vadd.f32 %v1232, %v646
        %v1249 = vadd.f32 %v1233, %v647
        %v1250 = vadd.f32 %v1234, %v648
        %v1251 = vadd.f32 %v1235, %v649
        %v1252 = vadd.f32 %v1236, %v650
        %v1253 = vadd.f32 %v1237, %v651
        %v1254 = vadd.f32 %v1238, %v652
        %v1255 = vadd.f32 %v1239, %v653
        %v1256 = vadd.f32 %v1240, %v654
        %v1257 = vpack.c.bf16 %v1242, %v1241
        %v1258 = vpack.c.bf16 %v1244, %v1243
        %v1259 = vpack.c.bf16 %v1246, %v1245
        %v1260 = vpack.c.bf16 %v1248, %v1247
        %v1261 = vpack.c.bf16 %v1250, %v1249
        %v1262 = vpack.c.bf16 %v1252, %v1251
        %v1263 = vpack.c.bf16 %v1254, %v1253
        %v1264 = vpack.c.bf16 %v1256, %v1255
        %s1265 = scalar_lea.vmem [#allocation5], 320
        %v1266 = vld [vmem:[%s1265] sm:$0xf]
        %v1267 = vld [vmem:[%s1265 + $0x4] sm:$0xf]
        %v1268 = vld [vmem:[%s1265 + $0x8] sm:$0xf]
        %v1269 = vld [vmem:[%s1265 + $0xc] sm:$0xf]
        %v1270 = vld [vmem:[%s1265 + $0x10] sm:$0xf]
        %v1271 = vld [vmem:[%s1265 + $0x14] sm:$0xf]
        %v1272 = vld [vmem:[%s1265 + $0x18] sm:$0xf]
        %v1273 = vld [vmem:[%s1265 + $0x1c] sm:$0xf]
        %v1274 = vld [vmem:[%s1265 + $0x20] sm:$0xf]
        %v1275 = vld [vmem:[%s1265 + $0x24] sm:$0xf]
        %v1276 = vld [vmem:[%s1265 + $0x28] sm:$0xf]
        %v1277 = vld [vmem:[%s1265 + $0x2c] sm:$0xf]
        %v1278 = vld [vmem:[%s1265 + $0x30] sm:$0xf]
        %v1279 = vld [vmem:[%s1265 + $0x34] sm:$0xf]
        %v1280 = vld [vmem:[%s1265 + $0x38] sm:$0xf]
        %v1281 = vld [vmem:[%s1265 + $0x3c] sm:$0xf]
        %v1282 = vlaneseq
        %v1283 = vshrl.u32 %v1282, 7
        %v1284 = vsub.s32 5, %v1283
        %v1285 = vrot.slane %v219, %v1284
        %v1302 = vunpack.c.l.b16 %v1266
        %v1303 = vunpack.c.l.b16 %v1267
        %v1304 = vunpack.c.l.b16 %v1268
        %v1305 = vunpack.c.l.b16 %v1269
        %v1306 = vunpack.c.l.b16 %v1270
        %v1307 = vunpack.c.l.b16 %v1271
        %v1308 = vunpack.c.l.b16 %v1272
        %v1309 = vunpack.c.l.b16 %v1273
        %v1310 = vunpack.c.l.b16 %v1274
        %v1311 = vunpack.c.l.b16 %v1275
        %v1312 = vunpack.c.l.b16 %v1276
        %v1313 = vunpack.c.l.b16 %v1277
        %v1314 = vunpack.c.l.b16 %v1278
        %v1315 = vunpack.c.l.b16 %v1279
        %v1316 = vunpack.c.l.b16 %v1280
        %v1317 = vunpack.c.l.b16 %v1281
        %v1318 = vpack.c.b16 %v1303, %v1302
        %v1319 = vpack.c.b16 %v1305, %v1304
        %v1320 = vpack.c.b16 %v1307, %v1306
        %v1321 = vpack.c.b16 %v1309, %v1308
        %v1322 = vpack.c.b16 %v1311, %v1310
        %v1323 = vpack.c.b16 %v1313, %v1312
        %v1324 = vpack.c.b16 %v1315, %v1314
        %v1325 = vpack.c.b16 %v1317, %v1316
        %1334 = vmatprep.subr.bf16.mxu0 0
        %1335 = vmatpush1.bf16.msra.mxu0 %v1325
        %1336 = vmatprep.subr.bf16.mxu0 0
        %1337 = vmatpush1.bf16.msra.mxu0 %v1324
        %1338 = vmatprep.subr.bf16.mxu0 0
        %1339 = vmatpush1.bf16.msra.mxu0 %v1323
        %1340 = vmatprep.subr.bf16.mxu0 0
        %1341 = vmatpush1.bf16.msra.mxu0 %v1322
        %1342 = vmatprep.subr.bf16.mxu0 0
        %1343 = vmatpush1.bf16.msra.mxu0 %v1321
        %1344 = vmatprep.subr.bf16.mxu0 0
        %1345 = vmatpush1.bf16.msra.mxu0 %v1320
        %1346 = vmatprep.subr.bf16.mxu0 0
        %1347 = vmatpush1.bf16.msra.mxu0 %v1319
        %1348 = vmatprep.subr.bf16.mxu0 0
        %1349 = vmatpush1.bf16.msra.mxu0 %v1318
        %1350 = vmatprep.subr.bf16.mxu0 0
        %1351 = vmatpush2.bf16.msra.mxu0 0
        %1352 = vmatprep.subr.bf16.mxu0 0
        %1353 = vmatpush2.bf16.msra.mxu0 0
        %1354 = vmatprep.subr.bf16.mxu0 0
        %1355 = vmatpush2.bf16.msra.mxu0 0
        %1356 = vmatprep.subr.bf16.mxu0 0
        %1357 = vmatpush2.bf16.msra.mxu0 0
        %1358 = vmatprep.subr.bf16.mxu0 0
        %1359 = vmatpush2.bf16.msra.mxu0 0
        %1360 = vmatprep.subr.bf16.mxu0 0
        %1361 = vmatpush2.bf16.msra.mxu0 0
        %1362 = vmatprep.subr.bf16.mxu0 0
        %1363 = vmatpush2.bf16.msra.mxu0 0
        %1364 = vmatprep.subr.bf16.mxu0 0
        %1365 = vmatpush2.bf16.msra.mxu0 0
        %1366 = vmatprep.mubr.bf16.mxu0 0
        %1367 = vmatmul.mubr.bf16.gmra.mxu0 %v1257
        %v1368 = vpop.f32.mrf.mxu0
        %v1369 = vadd.f32 %v1285, %v1368
        %v1370 = vpop.f32.mrf.mxu0
        %v1371 = vpop.f32.mrf.mxu0
        %v1372 = vadd.f32 %v1285, %v1371
        %v1373 = vpop.f32.mrf.mxu0
        %1374 = vmatprep.mubr.bf16.mxu0 0
        %1375 = vmatmul.mubr.bf16.gmra.mxu0 %v1258
        %v1376 = vpop.f32.mrf.mxu0
        %v1377 = vadd.f32 %v1285, %v1376
        %v1378 = vpop.f32.mrf.mxu0
        %v1379 = vpop.f32.mrf.mxu0
        %v1380 = vadd.f32 %v1285, %v1379
        %v1381 = vpop.f32.mrf.mxu0
        %1382 = vmatprep.mubr.bf16.mxu0 0
        %1383 = vmatmul.mubr.bf16.gmra.mxu0 %v1259
        %v1384 = vpop.f32.mrf.mxu0
        %v1385 = vadd.f32 %v1285, %v1384
        %v1386 = vpop.f32.mrf.mxu0
        %v1387 = vpop.f32.mrf.mxu0
        %v1388 = vadd.f32 %v1285, %v1387
        %v1389 = vpop.f32.mrf.mxu0
        %1390 = vmatprep.mubr.bf16.mxu0 0
        %1391 = vmatmul.mubr.bf16.gmra.mxu0 %v1260
        %v1392 = vpop.f32.mrf.mxu0
        %v1393 = vadd.f32 %v1285, %v1392
        %v1394 = vpop.f32.mrf.mxu0
        %v1395 = vpop.f32.mrf.mxu0
        %v1396 = vadd.f32 %v1285, %v1395
        %v1397 = vpop.f32.mrf.mxu0
        %1398 = vmatprep.mubr.bf16.mxu0 0
        %1399 = vmatmul.mubr.bf16.gmra.mxu0 %v1261
        %v1400 = vpop.f32.mrf.mxu0
        %v1401 = vadd.f32 %v1285, %v1400
        %v1402 = vpop.f32.mrf.mxu0
        %v1403 = vpop.f32.mrf.mxu0
        %v1404 = vadd.f32 %v1285, %v1403
        %v1405 = vpop.f32.mrf.mxu0
        %1406 = vmatprep.mubr.bf16.mxu0 0
        %1407 = vmatmul.mubr.bf16.gmra.mxu0 %v1262
        %v1408 = vpop.f32.mrf.mxu0
        %v1409 = vadd.f32 %v1285, %v1408
        %v1410 = vpop.f32.mrf.mxu0
        %v1411 = vpop.f32.mrf.mxu0
        %v1412 = vadd.f32 %v1285, %v1411
        %v1413 = vpop.f32.mrf.mxu0
        %1414 = vmatprep.mubr.bf16.mxu0 0
        %1415 = vmatmul.mubr.bf16.gmra.mxu0 %v1263
        %v1416 = vpop.f32.mrf.mxu0
        %v1417 = vadd.f32 %v1285, %v1416
        %v1418 = vpop.f32.mrf.mxu0
        %v1419 = vpop.f32.mrf.mxu0
        %v1420 = vadd.f32 %v1285, %v1419
        %v1421 = vpop.f32.mrf.mxu0
        %1422 = vmatprep.mubr.bf16.mxu0 0
        %1423 = vmatmul.mubr.bf16.gmra.mxu0 %v1264
        %v1424 = vpop.f32.mrf.mxu0
        %v1425 = vadd.f32 %v1285, %v1424
        %v1426 = vpop.f32.mrf.mxu0
        %v1427 = vpop.f32.mrf.mxu0
        %v1428 = vadd.f32 %v1285, %v1427
        %v1429 = vpop.f32.mrf.mxu0
        %1430 = vdwg.mxu0
        %v1431 = vmax.f32 %v1369, 0.0
        %v1432 = vmax.f32 %v1372, 0.0
        %v1433 = vmax.f32 %v1377, 0.0
        %v1434 = vmax.f32 %v1380, 0.0
        %v1435 = vmax.f32 %v1385, 0.0
        %v1436 = vmax.f32 %v1388, 0.0
        %v1437 = vmax.f32 %v1393, 0.0
        %v1438 = vmax.f32 %v1396, 0.0
        %v1439 = vmax.f32 %v1401, 0.0
        %v1440 = vmax.f32 %v1404, 0.0
        %v1441 = vmax.f32 %v1409, 0.0
        %v1442 = vmax.f32 %v1412, 0.0
        %v1443 = vmax.f32 %v1417, 0.0
        %v1444 = vmax.f32 %v1420, 0.0
        %v1445 = vmax.f32 %v1425, 0.0
        %v1446 = vmax.f32 %v1428, 0.0
        %v1447 = vadd.f32 %v1431, %v449
        %v1448 = vadd.f32 %v1432, %v450
        %v1449 = vadd.f32 %v1433, %v451
        %v1450 = vadd.f32 %v1434, %v452
        %v1451 = vadd.f32 %v1435, %v453
        %v1452 = vadd.f32 %v1436, %v454
        %v1453 = vadd.f32 %v1437, %v455
        %v1454 = vadd.f32 %v1438, %v456
        %v1455 = vadd.f32 %v1439, %v457
        %v1456 = vadd.f32 %v1440, %v458
        %v1457 = vadd.f32 %v1441, %v459
        %v1458 = vadd.f32 %v1442, %v460
        %v1459 = vadd.f32 %v1443, %v461
        %v1460 = vadd.f32 %v1444, %v462
        %v1461 = vadd.f32 %v1445, %v463
        %v1462 = vadd.f32 %v1446, %v464
        %v1463 = vpack.c.bf16 %v1448, %v1447
        %v1464 = vpack.c.bf16 %v1450, %v1449
        %v1465 = vpack.c.bf16 %v1452, %v1451
        %v1466 = vpack.c.bf16 %v1454, %v1453
        %v1467 = vpack.c.bf16 %v1456, %v1455
        %v1468 = vpack.c.bf16 %v1458, %v1457
        %v1469 = vpack.c.bf16 %v1460, %v1459
        %v1470 = vpack.c.bf16 %v1462, %v1461
        %s1471 = scalar_lea.vmem [#allocation5], 384
        %v1472 = vld [vmem:[%s1471] sm:$0xf]
        %v1473 = vld [vmem:[%s1471 + $0x4] sm:$0xf]
        %v1474 = vld [vmem:[%s1471 + $0x8] sm:$0xf]
        %v1475 = vld [vmem:[%s1471 + $0xc] sm:$0xf]
        %v1476 = vld [vmem:[%s1471 + $0x10] sm:$0xf]
        %v1477 = vld [vmem:[%s1471 + $0x14] sm:$0xf]
        %v1478 = vld [vmem:[%s1471 + $0x18] sm:$0xf]
        %v1479 = vld [vmem:[%s1471 + $0x1c] sm:$0xf]
        %v1480 = vld [vmem:[%s1471 + $0x20] sm:$0xf]
        %v1481 = vld [vmem:[%s1471 + $0x24] sm:$0xf]
        %v1482 = vld [vmem:[%s1471 + $0x28] sm:$0xf]
        %v1483 = vld [vmem:[%s1471 + $0x2c] sm:$0xf]
        %v1484 = vld [vmem:[%s1471 + $0x30] sm:$0xf]
        %v1485 = vld [vmem:[%s1471 + $0x34] sm:$0xf]
        %v1486 = vld [vmem:[%s1471 + $0x38] sm:$0xf]
        %v1487 = vld [vmem:[%s1471 + $0x3c] sm:$0xf]
        %v1488 = vlaneseq
        %v1489 = vshrl.u32 %v1488, 7
        %v1490 = vsub.s32 6, %v1489
        %v1491 = vrot.slane %v219, %v1490
        %v1508 = vunpack.c.l.b16 %v1472
        %v1509 = vunpack.c.l.b16 %v1473
        %v1510 = vunpack.c.l.b16 %v1474
        %v1511 = vunpack.c.l.b16 %v1475
        %v1512 = vunpack.c.l.b16 %v1476
        %v1513 = vunpack.c.l.b16 %v1477
        %v1514 = vunpack.c.l.b16 %v1478
        %v1515 = vunpack.c.l.b16 %v1479
        %v1516 = vunpack.c.l.b16 %v1480
        %v1517 = vunpack.c.l.b16 %v1481
        %v1518 = vunpack.c.l.b16 %v1482
        %v1519 = vunpack.c.l.b16 %v1483
        %v1520 = vunpack.c.l.b16 %v1484
        %v1521 = vunpack.c.l.b16 %v1485
        %v1522 = vunpack.c.l.b16 %v1486
        %v1523 = vunpack.c.l.b16 %v1487
        %v1524 = vpack.c.b16 %v1509, %v1508
        %v1525 = vpack.c.b16 %v1511, %v1510
        %v1526 = vpack.c.b16 %v1513, %v1512
        %v1527 = vpack.c.b16 %v1515, %v1514
        %v1528 = vpack.c.b16 %v1517, %v1516
        %v1529 = vpack.c.b16 %v1519, %v1518
        %v1530 = vpack.c.b16 %v1521, %v1520
        %v1531 = vpack.c.b16 %v1523, %v1522
        %1540 = vmatprep.subr.bf16.mxu0 0
        %1541 = vmatpush1.bf16.msra.mxu0 %v1531
        %1542 = vmatprep.subr.bf16.mxu0 0
        %1543 = vmatpush1.bf16.msra.mxu0 %v1530
        %1544 = vmatprep.subr.bf16.mxu0 0
        %1545 = vmatpush1.bf16.msra.mxu0 %v1529
        %1546 = vmatprep.subr.bf16.mxu0 0
        %1547 = vmatpush1.bf16.msra.mxu0 %v1528
        %1548 = vmatprep.subr.bf16.mxu0 0
        %1549 = vmatpush1.bf16.msra.mxu0 %v1527
        %1550 = vmatprep.subr.bf16.mxu0 0
        %1551 = vmatpush1.bf16.msra.mxu0 %v1526
        %1552 = vmatprep.subr.bf16.mxu0 0
        %1553 = vmatpush1.bf16.msra.mxu0 %v1525
        %1554 = vmatprep.subr.bf16.mxu0 0
        %1555 = vmatpush1.bf16.msra.mxu0 %v1524
        %1556 = vmatprep.subr.bf16.mxu0 0
        %1557 = vmatpush2.bf16.msra.mxu0 0
        %1558 = vmatprep.subr.bf16.mxu0 0
        %1559 = vmatpush2.bf16.msra.mxu0 0
        %1560 = vmatprep.subr.bf16.mxu0 0
        %1561 = vmatpush2.bf16.msra.mxu0 0
        %1562 = vmatprep.subr.bf16.mxu0 0
        %1563 = vmatpush2.bf16.msra.mxu0 0
        %1564 = vmatprep.subr.bf16.mxu0 0
        %1565 = vmatpush2.bf16.msra.mxu0 0
        %1566 = vmatprep.subr.bf16.mxu0 0
        %1567 = vmatpush2.bf16.msra.mxu0 0
        %1568 = vmatprep.subr.bf16.mxu0 0
        %1569 = vmatpush2.bf16.msra.mxu0 0
        %1570 = vmatprep.subr.bf16.mxu0 0
        %1571 = vmatpush2.bf16.msra.mxu0 0
        %1572 = vmatprep.mubr.bf16.mxu0 0
        %1573 = vmatmul.mubr.bf16.gmra.mxu0 %v1463
        %v1574 = vpop.f32.mrf.mxu0
        %v1575 = vadd.f32 %v1491, %v1574
        %v1576 = vpop.f32.mrf.mxu0
        %v1577 = vpop.f32.mrf.mxu0
        %v1578 = vadd.f32 %v1491, %v1577
        %v1579 = vpop.f32.mrf.mxu0
        %1580 = vmatprep.mubr.bf16.mxu0 0
        %1581 = vmatmul.mubr.bf16.gmra.mxu0 %v1464
        %v1582 = vpop.f32.mrf.mxu0
        %v1583 = vadd.f32 %v1491, %v1582
        %v1584 = vpop.f32.mrf.mxu0
        %v1585 = vpop.f32.mrf.mxu0
        %v1586 = vadd.f32 %v1491, %v1585
        %v1587 = vpop.f32.mrf.mxu0
        %1588 = vmatprep.mubr.bf16.mxu0 0
        %1589 = vmatmul.mubr.bf16.gmra.mxu0 %v1465
        %v1590 = vpop.f32.mrf.mxu0
        %v1591 = vadd.f32 %v1491, %v1590
        %v1592 = vpop.f32.mrf.mxu0
        %v1593 = vpop.f32.mrf.mxu0
        %v1594 = vadd.f32 %v1491, %v1593
        %v1595 = vpop.f32.mrf.mxu0
        %1596 = vmatprep.mubr.bf16.mxu0 0
        %1597 = vmatmul.mubr.bf16.gmra.mxu0 %v1466
        %v1598 = vpop.f32.mrf.mxu0
        %v1599 = vadd.f32 %v1491, %v1598
        %v1600 = vpop.f32.mrf.mxu0
        %v1601 = vpop.f32.mrf.mxu0
        %v1602 = vadd.f32 %v1491, %v1601
        %v1603 = vpop.f32.mrf.mxu0
        %1604 = vmatprep.mubr.bf16.mxu0 0
        %1605 = vmatmul.mubr.bf16.gmra.mxu0 %v1467
        %v1606 = vpop.f32.mrf.mxu0
        %v1607 = vadd.f32 %v1491, %v1606
        %v1608 = vpop.f32.mrf.mxu0
        %v1609 = vpop.f32.mrf.mxu0
        %v1610 = vadd.f32 %v1491, %v1609
        %v1611 = vpop.f32.mrf.mxu0
        %1612 = vmatprep.mubr.bf16.mxu0 0
        %1613 = vmatmul.mubr.bf16.gmra.mxu0 %v1468
        %v1614 = vpop.f32.mrf.mxu0
        %v1615 = vadd.f32 %v1491, %v1614
        %v1616 = vpop.f32.mrf.mxu0
        %v1617 = vpop.f32.mrf.mxu0
        %v1618 = vadd.f32 %v1491, %v1617
        %v1619 = vpop.f32.mrf.mxu0
        %1620 = vmatprep.mubr.bf16.mxu0 0
        %1621 = vmatmul.mubr.bf16.gmra.mxu0 %v1469
        %v1622 = vpop.f32.mrf.mxu0
        %v1623 = vadd.f32 %v1491, %v1622
        %v1624 = vpop.f32.mrf.mxu0
        %v1625 = vpop.f32.mrf.mxu0
        %v1626 = vadd.f32 %v1491, %v1625
        %v1627 = vpop.f32.mrf.mxu0
        %1628 = vmatprep.mubr.bf16.mxu0 0
        %1629 = vmatmul.mubr.bf16.gmra.mxu0 %v1470
        %v1630 = vpop.f32.mrf.mxu0
        %v1631 = vadd.f32 %v1491, %v1630
        %v1632 = vpop.f32.mrf.mxu0
        %v1633 = vpop.f32.mrf.mxu0
        %v1634 = vadd.f32 %v1491, %v1633
        %v1635 = vpop.f32.mrf.mxu0
        %1636 = vdwg.mxu0
        %1637 = vst [vmem:[%s215] sm:$0xff] %v1575
        %1638 = vst [vmem:[%s215 + $0x8] sm:$0xff] %v1578
        %1639 = vst [vmem:[%s215 + $0x10] sm:$0xff] %v1583
        %1640 = vst [vmem:[%s215 + $0x18] sm:$0xff] %v1586
        %1641 = vst [vmem:[%s215 + $0x20] sm:$0xff] %v1591
        %1642 = vst [vmem:[%s215 + $0x28] sm:$0xff] %v1594
        %1643 = vst [vmem:[%s215 + $0x30] sm:$0xff] %v1599
        %1644 = vst [vmem:[%s215 + $0x38] sm:$0xff] %v1602
        %1645 = vst [vmem:[%s215 + $0x40] sm:$0xff] %v1607
        %1646 = vst [vmem:[%s215 + $0x48] sm:$0xff] %v1610
        %1647 = vst [vmem:[%s215 + $0x50] sm:$0xff] %v1615
        %1648 = vst [vmem:[%s215 + $0x58] sm:$0xff] %v1618
        %1649 = vst [vmem:[%s215 + $0x60] sm:$0xff] %v1623
        %1650 = vst [vmem:[%s215 + $0x68] sm:$0xff] %v1626
        %1651 = vst [vmem:[%s215 + $0x70] sm:$0xff] %v1631
        %1652 = vst [vmem:[%s215 + $0x78] sm:$0xff] %v1634
        %s1653 = sand.u32 %s97, 1
        %s1654 = scalar_lea.sflag [#allocation4], %s1653
        %s1655 = sand.u32 %s97, 1
        %s1656 = smul.addr %s1655, 128
        %s1657 = scalar_lea.vmem [#allocation8], %s1656
        // Predicated region
        $region45: #{tpu_custom_call.1} parent=31 // pred_check
          %p1658 = pneg %p107
        $region46: #{tpu_custom_call.1} parent=31 // pred_check_branch
          %1660 = sbr.rel (%p1658) target = $region48
        $region47: #{tpu_custom_call.1} parent=31 // pred_region
          %s1661 = smul.u32 16, %s21
          %s1663 = ssub.s32 2048, 2048
          %1664 = vsyncadd %s1654, %s1663
          %s1665 = smul.addr %s1661, 128
          %s1666 = scalar_lea.hbm %s3, %s1665
          %s1667 = sshll.u32 %s1657, 4
          %s1668 = int_to_ptr.vmem [resolvable:$true] %s1667
          %1673 = dma.vmem_to_hbm [thread:$0]  %s1668, 2048, %s1666, %s1654, 128, 128, 8
        $region48: #{tpu_custom_call.1} parent=31 // pred_fallthru
          _
      $region32: #{tpu_custom_call.1} parent=5 // pred_fallthru
        _
      %p1674 = scmp.le.s32.totalorder 2, %s16
      // Predicated region
      $region49: #{tpu_custom_call.1} parent=5 // pred_check
        %p1675 = pneg %p1674
      $region50: #{tpu_custom_call.1} parent=5 // pred_check_branch
        %1677 = sbr.rel (%p1675) target = $region52
      $region51: #{tpu_custom_call.1} parent=5 // pred_region
        %s1678 = ssub.s32 %s16, 2
        // Predicated region
        $region53: #{tpu_custom_call.1} parent=51 // pred_check
          %p1679 = pneg %p113
        $region54: #{tpu_custom_call.1} parent=51 // pred_check_branch
          %1681 = sbr.rel (%p1679) target = $region56
        $region55: #{tpu_custom_call.1} parent=51 // pred_region
          %s1682 = sand.u32 %s98, 1
          %s1683 = scalar_lea.sflag [#allocation4], %s1682
          %s1684 = sand.u32 %s98, 1
          %s1685 = smul.addr %s1684, 128
          %s1686 = scalar_lea.vmem [#allocation8], %s1685
          %1687 = dma.done %s1683, 2048
        $region56: #{tpu_custom_call.1} parent=51 // pred_fallthru
          _
      $region52: #{tpu_custom_call.1} parent=5 // pred_fallthru
        _
    $region6: #{tpu_custom_call.1} parent=1 // loop_footer
      %s20 = sadd.s32 1, %s16
    $region7: #{tpu_custom_call.1} parent=1 // loop_footer_branch
      %15 = sbr.rel target = $region3
    $region8: #{tpu_custom_call.1} parent=1 // loop_exit
      _
    %1688 = vsyncpa [#allocation3], 1
    %s1689 = scalar_lea.sflag [#allocation3], 1
    %1690 = vsyncpa %s1689, 1
    %1691 = vsyncpa [#allocation6], 1
    %1692 = vsyncpa [#allocation4], 1
    %s1693 = scalar_lea.sflag [#allocation4], 1
    %1694 = vsyncpa %s1693, 1

</llo_original>
